<compile_context>
chip_gen: v6e
topology: v6e:2x2x1
jax: 0.10.0
libtpu: 0.0.40
codegen_flags: <defaults>
</compile_context>

<pallas_src>
import functools
import math
from typing import NamedTuple

import jax
import jax.numpy as jnp
from jax.experimental import pallas as pl
from jax.experimental.pallas import tpu as pltpu

EPS = 1e-5          # PyTorch nn.LayerNorm default
NEG_INF = -1e30     # finite "-inf" for the online softmax


def _round_up(a, m):
    return ((a + m - 1) // m) * m


def _gelu_exact(x):
    # nn.GELU() default = exact (erf) formulation.
    return 0.5 * x * (1.0 + jax.lax.erf(x * (1.0 / math.sqrt(2.0))))


def _layernorm_ref(x, w, b):
    mu = jnp.mean(x, axis=-1, keepdims=True)
    var = jnp.mean((x - mu) ** 2, axis=-1, keepdims=True)
    return (x - mu) * jax.lax.rsqrt(var + EPS) * w + b


# --------------------------------------------------------------------------
# hardware / feature detection (once)
# --------------------------------------------------------------------------

def _query_vmem_capacity():
    try:
        return int(pltpu.get_tpu_info().vmem_capacity_bytes)
    except Exception:
        return 64 * 1024 * 1024     # conservative (v7x-sized) default


_VMEM_CAP = _query_vmem_capacity()


@functools.lru_cache(maxsize=1)
def _buffered_supported():
    """Feature-probe pl.Buffered with a tiny kernel (no silent fallback on real kernels)."""
    if not hasattr(pl, "Buffered"):
        return False
    try:
        def _k(x_ref, o_ref):
            o_ref[...] = x_ref[...]
        out = pl.pallas_call(
            _k,
            out_shape=jax.ShapeDtypeStruct((8, 128), jnp.float32),
            grid=(2,),
            in_specs=[pl.BlockSpec((8, 128), lambda i: (0, 0),
                                   pipeline_mode=pl.Buffered(1))],
            out_specs=pl.BlockSpec((8, 128), lambda i: (0, 0)),
        )(jnp.zeros((8, 128), jnp.float32))
        jax.block_until_ready(out)
        return True
    except Exception:
        return False


def _vmem_limit(footprint):
    upper = max(_VMEM_CAP - (6 << 20), 24 << 20)
    return int(min(upper, max(int(1.25 * footprint) + (2 << 20), 32 << 20)))


# --------------------------------------------------------------------------
# kernels
# --------------------------------------------------------------------------

def _pool_kernel(x_ref, wv_ref, bv_ref, ws_ref, bs_ref, hexp_bf_ref, hexp_f32_ref,
                 out_ref, m_scr, l_scr, acc_scr, *, seq_len, needs_mask):
    """Flash-style attentive pooling: grid = (batch blocks, token blocks)."""
    nstep = pl.program_id(1)
    bblk, nblk, C = x_ref.shape
    hp = m_scr.shape[-1]
    f32, bf16 = jnp.float32, jnp.bfloat16

    @pl.when(nstep == 0)
    def _init():
        m_scr[...] = jnp.full_like(m_scr, NEG_INF)
        l_scr[...] = jnp.zeros_like(l_scr)
        acc_scr[...] = jnp.zeros_like(acc_scr)

    # ---- norm1 (affine folded into wv/ws) on the bf16 token tile, in f32 ----
    x = x_ref[...].astype(f32)
    mu = jnp.mean(x, axis=-1, keepdims=True)
    var = jnp.mean((x - mu) ** 2, axis=-1, keepdims=True)
    xn = ((x - mu) * jax.lax.rsqrt(var + EPS)).reshape(bblk * nblk, C).astype(bf16)

    # ---- value projection + per-head scores (query path & scale pre-folded) ----
    v = jnp.dot(xn, wv_ref[...], preferred_element_type=f32) + bv_ref[...]   # (B*N, C)
    s = jnp.dot(xn, ws_ref[...], preferred_element_type=f32) + bs_ref[...]   # (B*N, Hp)
    s = s.reshape(bblk, nblk, hp)
    if needs_mask:
        key_idx = nstep * nblk + jax.lax.broadcasted_iota(jnp.int32, s.shape, 1)
        s = jnp.where(key_idx < seq_len, s, NEG_INF)

    # ---- online softmax over the token axis ----
    m_prev = m_scr[...]                                 # (Bblk, Hp)
    m_new = jnp.maximum(m_prev, jnp.max(s, axis=1))
    alpha = jnp.exp(m_prev - m_new)
    p = jnp.exp(s - m_new[:, None, :])                  # (Bblk, Nblk, Hp)
    l_scr[...] = alpha * l_scr[...] + jnp.sum(p, axis=1)
    m_scr[...] = m_new

    p_full = jnp.dot(p.reshape(bblk * nblk, hp).astype(bf16), hexp_bf_ref[...],
                     preferred_element_type=f32)        # (B*N, C)
    pv = jnp.sum((p_full * v).reshape(bblk, nblk, C), axis=1)                # (Bblk, C)
    alpha_full = jnp.dot(alpha, hexp_f32_ref[...], preferred_element_type=f32)
    acc_scr[...] = alpha_full * acc_scr[...] + pv

    @pl.when(nstep == pl.num_programs(1) - 1)
    def _finalize():
        l_full = jnp.dot(l_scr[...], hexp_f32_ref[...], preferred_element_type=f32)
        out_ref[...] = acc_scr[...] / l_full            # exact normalization


def _epilogue_kernel(attn_ref, qtok_ref, wproj_ref, bproj_ref, wfc1_ref, bfc1_ref,
                     wfc2_ref, bfc2_ref, wlin_ref, blin_ref, out_ref):
    """proj + residual + norm2(MLP) + residual + classifier on pooled (Bblk, C)."""
    f32, bf16 = jnp.float32, jnp.bfloat16

    attn = jnp.dot(attn_ref[...].astype(bf16), wproj_ref[...],
                   preferred_element_type=f32) + bproj_ref[...]
    q1 = qtok_ref[...] + attn                                    # residual 1

    mu = jnp.mean(q1, axis=-1, keepdims=True)
    var = jnp.mean((q1 - mu) ** 2, axis=-1, keepdims=True)
    qn = (q1 - mu) * jax.lax.rsqrt(var + EPS)                    # norm2 affine folded into fc1

    h1 = jnp.dot(qn.astype(bf16), wfc1_ref[...], preferred_element_type=f32) + bfc1_ref[...]
    h1 = _gelu_exact(h1)
    h2 = jnp.dot(h1.astype(bf16), wfc2_ref[...], preferred_element_type=f32) + bfc2_ref[...]
    q2 = q1 + h2                                                 # residual 2

    out_ref[...] = jnp.dot(q2.astype(bf16), wlin_ref[...],
                           preferred_element_type=f32) + blin_ref[...]


# --------------------------------------------------------------------------
# pallas_call wrappers
# --------------------------------------------------------------------------

class _Config(NamedTuple):
    B: int; N: int; C: int
    num_heads: int; num_classes: int
    b_blk: int; n_blk: int
    b_pad: int; n_pad: int
    hp: int; nc_pad: int
    needs_mask: bool
    use_buffered: bool
    x_buffers: int


def _pool_call(x_pad, wv, bv, ws, bs, hexp_bf, hexp_f32, cfg):
    b_blk, n_blk, C = cfg.b_blk, cfg.n_blk, cfg.C
    weights = (wv, bv, ws, bs, hexp_bf, hexp_f32)

    wkw = {"pipeline_mode": pl.Buffered(1)} if cfg.use_buffered else {}
    xkw = ({"pipeline_mode": pl.Buffered(cfg.x_buffers)}
           if (cfg.use_buffered and cfg.x_buffers != 2) else {})

    in_specs = [pl.BlockSpec((b_blk, n_blk, C), lambda b, n: (b, n, 0), **xkw)]
    in_specs += [pl.BlockSpec(w.shape, lambda b, n: (0, 0), **wkw) for w in weights]
    out_spec = pl.BlockSpec((b_blk, C), lambda b, n: (b, 0))

    weight_bytes = sum(int(w.size) * w.dtype.itemsize for w in weights)
    wbuf = 1 if cfg.use_buffered else 2
    x_tile = b_blk * n_blk * C * 2                       # bf16
    out_tile = b_blk * C * 4
    work = 8 * b_blk * n_blk * C * 4 + 6 * b_blk * n_blk * cfg.hp * 4
    scratch = b_blk * (2 * cfg.hp + C) * 4
    footprint = (wbuf * weight_bytes + cfg.x_buffers * x_tile + 2 * out_tile
                 + work + scratch)

    kernel = functools.partial(_pool_kernel, seq_len=cfg.N, needs_mask=cfg.needs_mask)
    return pl.pallas_call(
        kernel,
        out_shape=jax.ShapeDtypeStruct((cfg.b_pad, C), jnp.float32),
        grid_spec=pltpu.PrefetchScalarGridSpec(
            num_scalar_prefetch=0,
            grid=(cfg.b_pad // b_blk, cfg.n_pad // n_blk),
            in_specs=in_specs,
            out_specs=out_spec,
            scratch_shapes=[
                pltpu.VMEM((b_blk, cfg.hp), jnp.float32),   # running max
                pltpu.VMEM((b_blk, cfg.hp), jnp.float32),   # running denominator
                pltpu.VMEM((b_blk, C), jnp.float32),        # running numerator
            ]),
        compiler_params=pltpu.CompilerParams(
            dimension_semantics=("parallel", "arbitrary"),
            vmem_limit_bytes=_vmem_limit(footprint)),
    )(x_pad, *weights)


def _epilogue_call(pooled, qtok, wproj, bproj, wfc1, bfc1, wfc2, bfc2, wlin, blin, cfg):
    b_blk, C = cfg.b_blk, cfg.C
    hid = wfc1.shape[-1]
    weights = (qtok, wproj, bproj, wfc1, bfc1, wfc2, bfc2, wlin, blin)
    wkw = {"pipeline_mode": pl.Buffered(1)} if cfg.use_buffered else {}

    in_specs = [pl.BlockSpec((b_blk, C), lambda b: (b, 0))]
    in_specs += [pl.BlockSpec(w.shape, lambda b: (0, 0), **wkw) for w in weights]
    out_spec = pl.BlockSpec((b_blk, cfg.nc_pad), lambda b: (b, 0))

    weight_bytes = sum(int(w.size) * w.dtype.itemsize for w in weights)
    wbuf = 1 if cfg.use_buffered else 2
    act = b_blk * (4 * C + 2 * hid + cfg.nc_pad) * 4
    footprint = (wbuf * weight_bytes
                 + 2 * (b_blk * C * 4 + b_blk * cfg.nc_pad * 4) + act)

    return pl.pallas_call(
        _epilogue_kernel,
        out_shape=jax.ShapeDtypeStruct((cfg.b_pad, cfg.nc_pad), jnp.float32),
        grid_spec=pltpu.PrefetchScalarGridSpec(
            num_scalar_prefetch=0,
            grid=(cfg.b_pad // b_blk,),
            in_specs=in_specs,
            out_specs=out_spec),
        compiler_params=pltpu.CompilerParams(
            dimension_semantics=("parallel",),
            vmem_limit_bytes=_vmem_limit(footprint)),
    )(pooled, *weights)


@functools.partial(jax.jit, static_argnames=("cfg",))
def _forward(x, params, *, cfg: _Config):
    C, H = cfg.C, cfg.num_heads
    hd = C // H
    scale = hd ** (-0.5)
    f32, bf16 = jnp.float32, jnp.bfloat16

    # ---- fold norm1 affine into the K/V projections ----
    n1w = params["n1w"].reshape(C, 1)
    wk_f = params["wk"] * n1w
    wv_f = params["wv"] * n1w
    bk_f = params["bk"] + params["n1b"] @ params["wk"]
    bv_f = params["bv"] + params["n1b"] @ params["wv"]

    # ---- fold the batch-independent query path (+ scale) into the score projection ----
    qps = (params["qtok"] @ params["wq"] + params["bq"]) * scale             # (1, C)
    head_of = jnp.arange(C, dtype=jnp.int32) // hd
    hsel = (head_of[:, None] == jnp.arange(cfg.hp)[None, :]).astype(f32)     # (C, Hp)
    hsum_q = hsel * qps.reshape(C, 1)                                        # (C, Hp)
    ws = wk_f @ hsum_q                                                       # (C, Hp)
    bs = bk_f @ hsum_q                                                       # (1, Hp)
    hexp_f32 = hsel.T                                                        # (Hp, C)

    # ---- fold norm2 affine into fc1 ----
    n2w = params["n2w"].reshape(C, 1)
    wfc1_f = params["wfc1"] * n2w
    bfc1_f = params["bfc1"] + params["n2b"] @ params["wfc1"]

    # ---- lane-dense classifier slab ----
    wlin = jnp.pad(params["wlin"], ((0, 0), (0, cfg.nc_pad - cfg.num_classes)))
    blin = jnp.pad(params["blin"], ((0, 0), (0, cfg.nc_pad - cfg.num_classes)))

    # ---- stream x as bf16; pad fused with the cast under this jit ----
    x_pad = jnp.pad(x, ((0, cfg.b_pad - cfg.B), (0, cfg.n_pad - cfg.N), (0, 0)))
    x_pad = x_pad.astype(bf16)

    pooled = _pool_call(x_pad, wv_f.astype(bf16), bv_f, ws.astype(bf16), bs,
                        hexp_f32.astype(bf16), hexp_f32, cfg)
    logits = _epilogue_call(pooled, params["qtok"], params["wproj"].astype(bf16),
                            params["bproj"], wfc1_f.astype(bf16), bfc1_f,
                            params["wfc2"].astype(bf16), params["bfc2"],
                            wlin.astype(bf16), blin, cfg)
    return logits[:cfg.B, :cfg.num_classes]


def _choose_n_blk(N, max_blk):
    n8 = _round_up(N, 8)
    if n8 <= max_blk:
        return n8
    best = 0
    for d in range(8, max_blk + 1, 8):       # largest divisor of N -> no pad, no mask
        if N % d == 0:
            best = d
    if best >= max_blk // 2:
        return best
    return max_blk


def attentive_classifier(x, params, *, num_heads):
    """x: (B, N, C) float32 -> logits (B, num_classes) float32."""
    B, N, C = x.shape
    assert C % num_heads == 0
    num_classes = params["wlin"].shape[-1]

    b_blk = 128 if B >= 128 else _round_up(B, 8)
    b_pad = _round_up(B, b_blk)
    hp = _round_up(num_heads, 128)
    nc_pad = _round_up(num_classes, 128)

    big_vmem = _VMEM_CAP >= (100 << 20)                  # v5e/v6e (128 MiB) vs v7x (64 MiB)
    x_tile_target = (8 << 20) if big_vmem else (2 << 20)  # bf16 x tile bytes
    max_nblk = max(8, (x_tile_target // (b_blk * C * 2)) // 8 * 8)
    n_blk = _choose_n_blk(N, max_nblk)
    n_pad = _round_up(N, n_blk)

    use_buffered = _buffered_supported()
    x_buffers = 3 if (use_buffered and big_vmem) else 2

    cfg = _Config(B=B, N=N, C=C, num_heads=num_heads, num_classes=num_classes,
                  b_blk=b_blk, n_blk=n_blk, b_pad=b_pad, n_pad=n_pad,
                  hp=hp, nc_pad=nc_pad, needs_mask=(n_pad != N),
                  use_buffered=use_buffered, x_buffers=x_buffers)
    return _forward(x, params, cfg=cfg)


# --------------------------------------------------------------------------
# pure-JAX reference + synthetic params
# --------------------------------------------------------------------------

def reference_forward(x, params, *, num_heads):
    B, N, C = x.shape
    hd = C // num_heads
    scale = hd ** (-0.5)

    q0 = jnp.broadcast_to(params["qtok"][None], (B, 1, C))
    xn = _layernorm_ref(x, params["n1w"], params["n1b"])
    qp = q0 @ params["wq"] + params["bq"]
    k = xn @ params["wk"] + params["bk"]
    v = xn @ params["wv"] + params["bv"]

    qh = qp.reshape(B, 1, num_heads, hd).transpose(0, 2, 1, 3)
    kh = k.reshape(B, N, num_heads, hd).transpose(0, 2, 1, 3)
    vh = v.reshape(B, N, num_heads, hd).transpose(0, 2, 1, 3)
    s = jnp.einsum("bhqd,bhkd->bhqk", qh, kh) * scale
    p = jax.nn.softmax(s, axis=-1)
    o = jnp.einsum("bhqk,bhkd->bhqd", p, vh)
    o = o.transpose(0, 2, 1, 3).reshape(B, 1, C)
    o = o @ params["wproj"] + params["bproj"]

    q1 = q0 + o
    qn = _layernorm_ref(q1, params["n2w"], params["n2b"])
    h1 = _gelu_exact(qn @ params["wfc1"] + params["bfc1"])
    h2 = h1 @ params["wfc2"] + params["bfc2"]
    q2 = q1 + h2
    return (q2 @ params["wlin"] + params["blin"]).reshape(B, -1)


def make_params(key, *, embed_dim, num_heads, mlp_ratio, num_classes, init_std=0.02):
    """Synthetic init mimicking AttentivePooler._init_weights/_rescale_blocks.
    Linear weights stored as (in_features, out_features)."""
    hidden = int(embed_dim * mlp_ratio)
    ks = jax.random.split(key, 8)
    nrm = lambda k, shape: (init_std * jax.random.normal(k, shape)).astype(jnp.float32)
    return {
        "qtok": nrm(ks[0], (1, embed_dim)),
        "n1w": jnp.ones((1, embed_dim), jnp.float32),
        "n1b": jnp.zeros((1, embed_dim), jnp.float32),
        "wq": nrm(ks[1], (embed_dim, embed_dim)),
        "bq": jnp.zeros((1, embed_dim), jnp.float32),
        "wk": nrm(ks[2], (embed_dim, embed_dim)),
        "bk": jnp.zeros((1, embed_dim), jnp.float32),
        "wv": nrm(ks[3], (embed_dim, embed_dim)),
        "bv": jnp.zeros((1, embed_dim), jnp.float32),
        "wproj": nrm(ks[4], (embed_dim, embed_dim)) / math.sqrt(2.0),
        "bproj": jnp.zeros((1, embed_dim), jnp.float32),
        "n2w": jnp.ones((1, embed_dim), jnp.float32),
        "n2b": jnp.zeros((1, embed_dim), jnp.float32),
        "wfc1": nrm(ks[5], (embed_dim, hidden)),
        "bfc1": jnp.zeros((1, hidden), jnp.float32),
        "wfc2": nrm(ks[6], (hidden, embed_dim)) / math.sqrt(2.0),
        "bfc2": jnp.zeros((1, embed_dim), jnp.float32),
        "wlin": nrm(ks[7], (embed_dim, num_classes)),
        "blin": jnp.zeros((1, num_classes), jnp.float32),
    }


if __name__ == "__main__":
    # TODO(synk): depth>1 (extra self-attention Blocks) is not implemented; the PyTorch
    # module's defaults (depth=1, num_queries=1, complete_block=True) are what is covered.
    B, N, C = 2, 8, 64
    num_heads = 4
    mlp_ratio = 4.0
    num_classes = 16

    key = jax.random.PRNGKey(0)
    kx, kp = jax.random.split(key)
    x = jax.random.normal(kx, (B, N, C), dtype=jnp.float32)
    params = make_params(kp, embed_dim=C, num_heads=num_heads,
                         mlp_ratio=mlp_ratio, num_classes=num_classes)

    logits = attentive_classifier(x, params, num_heads=num_heads)
    logits = jax.block_until_ready(logits)

    ref = reference_forward(x, params, num_heads=num_heads)
    assert logits.shape == (B, num_classes)
    err = jnp.max(jnp.abs(logits - ref))
    # bf16 x/weights in the kernel vs. f32 reference -> loose tolerance
    assert jnp.allclose(logits, ref, rtol=3e-2, atol=5e-3), f"max abs diff {err}"

    print("KERNEL_OK")
</pallas_src>

<mosaic_0001>
module attributes {stable_mosaic.version = 11 : i64} {
  func.func @_k(%arg0: i32, %arg1: memref<8x128xf32, #tpu.memory_space<vmem>>, %arg2: memref<8x128xf32, #tpu.memory_space<vmem>>) attributes {dimension_semantics = [#tpu.dimension_semantics<arbitrary>], iteration_bounds = array<i64: 2>, scalar_prefetch = 0 : i64, scratch_operands = 0 : i64, tpu.core_type = #tpu.core_type<tc>, window_params = [{pipeline_mode = #tpu.pipeline_mode<synchronous>, transform_indices = @transform_0, window_bounds = array<i64: 8, 128>}, {pipeline_mode = #tpu.pipeline_mode<synchronous>, transform_indices = @transform_1, window_bounds = array<i64: 8, 128>}]} {
    %c0 = arith.constant 0 : index
    %c0_0 = arith.constant 0 : index
    %0 = vector.load %arg1[%c0, %c0_0] : memref<8x128xf32, #tpu.memory_space<vmem>>, vector<8x128xf32>
    %c0_1 = arith.constant 0 : index
    %c0_2 = arith.constant 0 : index
    %1 = vector.load %arg2[%c0_1, %c0_2] : memref<8x128xf32, #tpu.memory_space<vmem>>, vector<8x128xf32>
    tpu.vector_store %arg2[%c0_1, %c0_2], %0 {strides = array<i32>} : memref<8x128xf32, #tpu.memory_space<vmem>>, vector<8x128xf32>,
    return
  }
  func.func @transform_0(%arg0: i32) -> (i32, i32) {
    %c0_i32 = arith.constant 0 : i32
    %c0_i32_0 = arith.constant 0 : i32
    %c0_i32_1 = arith.constant 0 : i32
    return %c0_i32, %c0_i32_0 : i32, i32
  }
  func.func @transform_1(%arg0: i32) -> (i32, i32) {
    %c0_i32 = arith.constant 0 : i32
    %c0_i32_0 = arith.constant 0 : i32
    %c0_i32_1 = arith.constant 0 : i32
    return %c0_i32, %c0_i32_0 : i32, i32
  }
}

module attributes {stable_mosaic.version = 11 : i64} {
  func.func @_pool_kernel(%arg0: i32, %arg1: i32, %arg2: memref<8x8x64xbf16, #tpu.memory_space<vmem>>, %arg3: memref<64x64xbf16, #tpu.memory_space<vmem>>, %arg4: memref<1x64xf32, #tpu.memory_space<vmem>>, %arg5: memref<64x128xbf16, #tpu.memory_space<vmem>>, %arg6: memref<1x128xf32, #tpu.memory_space<vmem>>, %arg7: memref<128x64xbf16, #tpu.memory_space<vmem>>, %arg8: memref<128x64xf32, #tpu.memory_space<vmem>>, %arg9: memref<8x64xf32, #tpu.memory_space<vmem>>, %arg10: memref<8x128xf32, #tpu.memory_space<vmem>>, %arg11: memref<8x128xf32, #tpu.memory_space<vmem>>, %arg12: memref<8x64xf32, #tpu.memory_space<vmem>>) attributes {dimension_semantics = [#tpu.dimension_semantics<parallel>, #tpu.dimension_semantics<arbitrary>], iteration_bounds = array<i64: 1, 1>, scalar_prefetch = 0 : i64, scratch_operands = 3 : i64, tpu.core_type = #tpu.core_type<tc>, window_params = [{transform_indices = @transform_0, window_bounds = array<i64: 8, 8, 64>}, {pipeline_mode = #tpu.pipeline_mode<synchronous>, transform_indices = @transform_1, window_bounds = array<i64: 64, 64>}, {pipeline_mode = #tpu.pipeline_mode<synchronous>, transform_indices = @transform_2, window_bounds = array<i64: 1, 64>}, {pipeline_mode = #tpu.pipeline_mode<synchronous>, transform_indices = @transform_3, window_bounds = array<i64: 64, 128>}, {pipeline_mode = #tpu.pipeline_mode<synchronous>, transform_indices = @transform_4, window_bounds = array<i64: 1, 128>}, {pipeline_mode = #tpu.pipeline_mode<synchronous>, transform_indices = @transform_5, window_bounds = array<i64: 128, 64>}, {pipeline_mode = #tpu.pipeline_mode<synchronous>, transform_indices = @transform_6, window_bounds = array<i64: 128, 64>}, {transform_indices = @transform_7, window_bounds = array<i64: 8, 64>}]} {
    %c0_i32 = arith.constant 0 : i32
    %0 = arith.cmpi eq, %arg1, %c0_i32 : i32
    %1 = arith.extui %0 : i1 to i32
    %c0_i32_0 = arith.constant 0 : i32
    %2 = arith.cmpi ne, %1, %c0_i32_0 : i32
    scf.if %2 {
      %cst_40 = arith.constant -1.000000e+30 : f32
      %67 = vector.broadcast %cst_40 : f32 to vector<8x128xf32>
      %c0_41 = arith.constant 0 : index
      %c0_42 = arith.constant 0 : index
      %68 = vector.load %arg10[%c0_41, %c0_42] : memref<8x128xf32, #tpu.memory_space<vmem>>, vector<8x128xf32>
      tpu.vector_store %arg10[%c0_41, %c0_42], %67 {strides = array<i32>} : memref<8x128xf32, #tpu.memory_space<vmem>>, vector<8x128xf32>,
      %cst_43 = arith.constant 0.000000e+00 : f32
      %69 = vector.broadcast %cst_43 : f32 to vector<8x128xf32>
      %c0_44 = arith.constant 0 : index
      %c0_45 = arith.constant 0 : index
      %70 = vector.load %arg11[%c0_44, %c0_45] : memref<8x128xf32, #tpu.memory_space<vmem>>, vector<8x128xf32>
      tpu.vector_store %arg11[%c0_44, %c0_45], %69 {strides = array<i32>} : memref<8x128xf32, #tpu.memory_space<vmem>>, vector<8x128xf32>,
      %cst_46 = arith.constant 0.000000e+00 : f32
      %71 = vector.broadcast %cst_46 : f32 to vector<8x64xf32>
      %c0_47 = arith.constant 0 : index
      %c0_48 = arith.constant 0 : index
      %72 = vector.load %arg12[%c0_47, %c0_48] : memref<8x64xf32, #tpu.memory_space<vmem>>, vector<8x64xf32>
      tpu.vector_store %arg12[%c0_47, %c0_48], %71 {strides = array<i32>} : memref<8x64xf32, #tpu.memory_space<vmem>>, vector<8x64xf32>,
    } else {
    }
    %c0 = arith.constant 0 : index
    %c0_1 = arith.constant 0 : index
    %c0_2 = arith.constant 0 : index
    %3 = vector.load %arg2[%c0, %c0_1, %c0_2] : memref<8x8x64xbf16, #tpu.memory_space<vmem>>, vector<8x8x64xbf16>
    %4 = arith.extf %3 : vector<8x8x64xbf16> to vector<8x8x64xf32>
    %cst = arith.constant dense<0.000000e+00> : vector<8x8xf32>
    %5 = vector.multi_reduction <add>, %4, %cst [2] : vector<8x8x64xf32> to vector<8x8xf32>
    %6 = vector.shape_cast %5 : vector<8x8xf32> to vector<8x8x1xf32>
    %cst_3 = arith.constant 6.400000e+01 : f32
    %7 = vector.broadcast %cst_3 : f32 to vector<8x8x1xf32>
    %8 = arith.divf %6, %7 : vector<8x8x1xf32>
    %9 = vector.broadcast %8 : vector<8x8x1xf32> to vector<8x8x64xf32>
    %10 = arith.subf %4, %9 : vector<8x8x64xf32>
    %11 = arith.mulf %10, %10 : vector<8x8x64xf32>
    %cst_4 = arith.constant dense<0.000000e+00> : vector<8x8xf32>
    %12 = vector.multi_reduction <add>, %11, %cst_4 [2] : vector<8x8x64xf32> to vector<8x8xf32>
    %13 = vector.shape_cast %12 : vector<8x8xf32> to vector<8x8x1xf32>
    %cst_5 = arith.constant 6.400000e+01 : f32
    %14 = vector.broadcast %cst_5 : f32 to vector<8x8x1xf32>
    %15 = arith.divf %13, %14 : vector<8x8x1xf32>
    %16 = vector.broadcast %8 : vector<8x8x1xf32> to vector<8x8x64xf32>
    %17 = arith.subf %4, %16 : vector<8x8x64xf32>
    %cst_6 = arith.constant 9.99999974E-6 : f32
    %18 = vector.broadcast %cst_6 : f32 to vector<8x8x1xf32>
    %19 = arith.addf %15, %18 : vector<8x8x1xf32>
    %20 = math.rsqrt %19 : vector<8x8x1xf32>
    %21 = vector.broadcast %20 : vector<8x8x1xf32> to vector<8x8x64xf32>
    %22 = arith.mulf %17, %21 : vector<8x8x64xf32>
    %23 = vector.shape_cast %22 : vector<8x8x64xf32> to vector<64x64xf32>
    %24 = arith.truncf %23 : vector<64x64xf32> to vector<64x64xbf16>
    %c0_7 = arith.constant 0 : index
    %c0_8 = arith.constant 0 : index
    %25 = vector.load %arg3[%c0_7, %c0_8] : memref<64x64xbf16, #tpu.memory_space<vmem>>, vector<64x64xbf16>
    %cst_9 = arith.constant dense<0.000000e+00> : vector<64x64xf32>
    %26 = tpu.matmul %24, %25, %cst_9 {dimension_numbers = #tpu.dot_dimension_numbers<[1], [0], [0], [1], [0, 0, 1, 1], [], []>} : vector<64x64xbf16>, vector<64x64xbf16>, vector<64x64xf32> -> vector<64x64xf32>
    %c0_10 = arith.constant 0 : index
    %c0_11 = arith.constant 0 : index
    %27 = vector.load %arg4[%c0_10, %c0_11] : memref<1x64xf32, #tpu.memory_space<vmem>>, vector<1x64xf32>
    %28 = vector.broadcast %27 : vector<1x64xf32> to vector<64x64xf32>
    %29 = arith.addf %26, %28 : vector<64x64xf32>
    %c0_12 = arith.constant 0 : index
    %c0_13 = arith.constant 0 : index
    %30 = vector.load %arg5[%c0_12, %c0_13] : memref<64x128xbf16, #tpu.memory_space<vmem>>, vector<64x128xbf16>
    %cst_14 = arith.constant dense<0.000000e+00> : vector<64x128xf32>
    %31 = tpu.matmul %24, %30, %cst_14 {dimension_numbers = #tpu.dot_dimension_numbers<[1], [0], [0], [1], [0, 0, 1, 1], [], []>} : vector<64x64xbf16>, vector<64x128xbf16>, vector<64x128xf32> -> vector<64x128xf32>
    %c0_15 = arith.constant 0 : index
    %c0_16 = arith.constant 0 : index
    %32 = vector.load %arg6[%c0_15, %c0_16] : memref<1x128xf32, #tpu.memory_space<vmem>>, vector<1x128xf32>
    %33 = vector.broadcast %32 : vector<1x128xf32> to vector<64x128xf32>
    %34 = arith.addf %31, %33 : vector<64x128xf32>
    %35 = vector.shape_cast %34 : vector<64x128xf32> to vector<8x8x128xf32>
    %c0_17 = arith.constant 0 : index
    %c0_18 = arith.constant 0 : index
    %36 = vector.load %arg10[%c0_17, %c0_18] : memref<8x128xf32, #tpu.memory_space<vmem>>, vector<8x128xf32>
    %cst_19 = arith.constant dense<0xFF800000> : vector<8x128xf32>
    %37 = vector.multi_reduction <maximumf>, %35, %cst_19 [1] : vector<8x8x128xf32> to vector<8x128xf32>
    %38 = arith.maximumf %36, %37 : vector<8x128xf32>
    %39 = arith.subf %36, %38 : vector<8x128xf32>
    %40 = math.exp %39 : vector<8x128xf32>
    %41 = vector.shape_cast %38 : vector<8x128xf32> to vector<8x1x128xf32>
    %42 = vector.broadcast %41 : vector<8x1x128xf32> to vector<8x8x128xf32>
    %43 = arith.subf %35, %42 : vector<8x8x128xf32>
    %44 = math.exp %43 : vector<8x8x128xf32>
    %c0_20 = arith.constant 0 : index
    %c0_21 = arith.constant 0 : index
    %45 = vector.load %arg11[%c0_20, %c0_21] : memref<8x128xf32, #tpu.memory_space<vmem>>, vector<8x128xf32>
    %46 = arith.mulf %40, %45 : vector<8x128xf32>
    %cst_22 = arith.constant dense<0.000000e+00> : vector<8x128xf32>
    %47 = vector.multi_reduction <add>, %44, %cst_22 [1] : vector<8x8x128xf32> to vector<8x128xf32>
    %48 = arith.addf %46, %47 : vector<8x128xf32>
    %c0_23 = arith.constant 0 : index
    %c0_24 = arith.constant 0 : index
    %49 = vector.load %arg11[%c0_23, %c0_24] : memref<8x128xf32, #tpu.memory_space<vmem>>, vector<8x128xf32>
    tpu.vector_store %arg11[%c0_23, %c0_24], %48 {strides = array<i32>} : memref<8x128xf32, #tpu.memory_space<vmem>>, vector<8x128xf32>,
    %c0_25 = arith.constant 0 : index
    %c0_26 = arith.constant 0 : index
    %50 = vector.load %arg10[%c0_25, %c0_26] : memref<8x128xf32, #tpu.memory_space<vmem>>, vector<8x128xf32>
    tpu.vector_store %arg10[%c0_25, %c0_26], %38 {strides = array<i32>} : memref<8x128xf32, #tpu.memory_space<vmem>>, vector<8x128xf32>,
    %51 = vector.shape_cast %44 : vector<8x8x128xf32> to vector<64x128xf32>
    %52 = arith.truncf %51 : vector<64x128xf32> to vector<64x128xbf16>
    %c0_27 = arith.constant 0 : index
    %c0_28 = arith.constant 0 : index
    %53 = vector.load %arg7[%c0_27, %c0_28] : memref<128x64xbf16, #tpu.memory_space<vmem>>, vector<128x64xbf16>
    %cst_29 = arith.constant dense<0.000000e+00> : vector<64x64xf32>
    %54 = tpu.matmul %52, %53, %cst_29 {dimension_numbers = #tpu.dot_dimension_numbers<[1], [0], [0], [1], [0, 0, 1, 1], [], []>} : vector<64x128xbf16>, vector<128x64xbf16>, vector<64x64xf32> -> vector<64x64xf32>
    %55 = arith.mulf %54, %29 : vector<64x64xf32>
    %56 = vector.shape_cast %55 : vector<64x64xf32> to vector<8x8x64xf32>
    %cst_30 = arith.constant dense<0.000000e+00> : vector<8x64xf32>
    %57 = vector.multi_reduction <add>, %56, %cst_30 [1] : vector<8x8x64xf32> to vector<8x64xf32>
    %c0_31 = arith.constant 0 : index
    %c0_32 = arith.constant 0 : index
    %58 = vector.load %arg8[%c0_31, %c0_32] : memref<128x64xf32, #tpu.memory_space<vmem>>, vector<128x64xf32>
    %cst_33 = arith.constant dense<0.000000e+00> : vector<8x64xf32>
    %59 = tpu.matmul %40, %58, %cst_33 {dimension_numbers = #tpu.dot_dimension_numbers<[1], [0], [0], [1], [0, 0, 1, 1], [], []>} : vector<8x128xf32>, vector<128x64xf32>, vector<8x64xf32> -> vector<8x64xf32>
    %c0_34 = arith.constant 0 : index
    %c0_35 = arith.constant 0 : index
    %60 = vector.load %arg12[%c0_34, %c0_35] : memref<8x64xf32, #tpu.memory_space<vmem>>, vector<8x64xf32>
    %61 = arith.mulf %59, %60 : vector<8x64xf32>
    %62 = arith.addf %61, %57 : vector<8x64xf32>
    %c0_36 = arith.constant 0 : index
    %c0_37 = arith.constant 0 : index
    %63 = vector.load %arg12[%c0_36, %c0_37] : memref<8x64xf32, #tpu.memory_space<vmem>>, vector<8x64xf32>
    tpu.vector_store %arg12[%c0_36, %c0_37], %62 {strides = array<i32>} : memref<8x64xf32, #tpu.memory_space<vmem>>, vector<8x64xf32>,
    %c0_i32_38 = arith.constant 0 : i32
    %64 = arith.cmpi eq, %arg1, %c0_i32_38 : i32
    %65 = arith.extui %64 : i1 to i32
    %c0_i32_39 = arith.constant 0 : i32
    %66 = arith.cmpi ne, %65, %c0_i32_39 : i32
    scf.if %66 {
      %c0_40 = arith.constant 0 : index
      %c0_41 = arith.constant 0 : index
      %67 = vector.load %arg11[%c0_40, %c0_41] : memref<8x128xf32, #tpu.memory_space<vmem>>, vector<8x128xf32>
      %c0_42 = arith.constant 0 : index
      %c0_43 = arith.constant 0 : index
      %68 = vector.load %arg8[%c0_42, %c0_43] : memref<128x64xf32, #tpu.memory_space<vmem>>, vector<128x64xf32>
      %cst_44 = arith.constant dense<0.000000e+00> : vector<8x64xf32>
      %69 = tpu.matmul %67, %68, %cst_44 {dimension_numbers = #tpu.dot_dimension_numbers<[1], [0], [0], [1], [0, 0, 1, 1], [], []>} : vector<8x128xf32>, vector<128x64xf32>, vector<8x64xf32> -> vector<8x64xf32>
      %c0_45 = arith.constant 0 : index
      %c0_46 = arith.constant 0 : index
      %70 = vector.load %arg12[%c0_45, %c0_46] : memref<8x64xf32, #tpu.memory_space<vmem>>, vector<8x64xf32>
      %71 = arith.divf %70, %69 : vector<8x64xf32>
      %c0_47 = arith.constant 0 : index
      %c0_48 = arith.constant 0 : index
      %72 = vector.load %arg9[%c0_47, %c0_48] : memref<8x64xf32, #tpu.memory_space<vmem>>, vector<8x64xf32>
      tpu.vector_store %arg9[%c0_47, %c0_48], %71 {strides = array<i32>} : memref<8x64xf32, #tpu.memory_space<vmem>>, vector<8x64xf32>,
    } else {
    }
    return
  }
  func.func @transform_0(%arg0: i32, %arg1: i32) -> (i32, i32, i32) {
    %c0_i32 = arith.constant 0 : i32
    %c0_i32_0 = arith.constant 0 : i32
    return %arg0, %arg1, %c0_i32 : i32, i32, i32
  }
  func.func @transform_1(%arg0: i32, %arg1: i32) -> (i32, i32) {
    %c0_i32 = arith.constant 0 : i32
    %c0_i32_0 = arith.constant 0 : i32
    %c0_i32_1 = arith.constant 0 : i32
    return %c0_i32, %c0_i32_0 : i32, i32
  }
  func.func @transform_2(%arg0: i32, %arg1: i32) -> (i32, i32) {
    %c0_i32 = arith.constant 0 : i32
    %c0_i32_0 = arith.constant 0 : i32
    %c0_i32_1 = arith.constant 0 : i32
    return %c0_i32, %c0_i32_0 : i32, i32
  }
  func.func @transform_3(%arg0: i32, %arg1: i32) -> (i32, i32) {
    %c0_i32 = arith.constant 0 : i32
    %c0_i32_0 = arith.constant 0 : i32
    %c0_i32_1 = arith.constant 0 : i32
    return %c0_i32, %c0_i32_0 : i32, i32
  }
  func.func @transform_4(%arg0: i32, %arg1: i32) -> (i32, i32) {
    %c0_i32 = arith.constant 0 : i32
    %c0_i32_0 = arith.constant 0 : i32
    %c0_i32_1 = arith.constant 0 : i32
    return %c0_i32, %c0_i32_0 : i32, i32
  }
  func.func @transform_5(%arg0: i32, %arg1: i32) -> (i32, i32) {
    %c0_i32 = arith.constant 0 : i32
    %c0_i32_0 = arith.constant 0 : i32
    %c0_i32_1 = arith.constant 0 : i32
    return %c0_i32, %c0_i32_0 : i32, i32
  }
  func.func @transform_6(%arg0: i32, %arg1: i32) -> (i32, i32) {
    %c0_i32 = arith.constant 0 : i32
    %c0_i32_0 = arith.constant 0 : i32
    %c0_i32_1 = arith.constant 0 : i32
    return %c0_i32, %c0_i32_0 : i32, i32
  }
  func.func @transform_7(%arg0: i32, %arg1: i32) -> (i32, i32) {
    %c0_i32 = arith.constant 0 : i32
    %c0_i32_0 = arith.constant 0 : i32
    return %arg0, %c0_i32 : i32, i32
  }
}

module attributes {stable_mosaic.version = 11 : i64} {
  func.func @_epilogue_kernel(%arg0: i32, %arg1: memref<8x64xf32, #tpu.memory_space<vmem>>, %arg2: memref<1x64xf32, #tpu.memory_space<vmem>>, %arg3: memref<64x64xbf16, #tpu.memory_space<vmem>>, %arg4: memref<1x64xf32, #tpu.memory_space<vmem>>, %arg5: memref<64x256xbf16, #tpu.memory_space<vmem>>, %arg6: memref<1x256xf32, #tpu.memory_space<vmem>>, %arg7: memref<256x64xbf16, #tpu.memory_space<vmem>>, %arg8: memref<1x64xf32, #tpu.memory_space<vmem>>, %arg9: memref<64x128xbf16, #tpu.memory_space<vmem>>, %arg10: memref<1x128xf32, #tpu.memory_space<vmem>>, %arg11: memref<8x128xf32, #tpu.memory_space<vmem>>) attributes {dimension_semantics = [#tpu.dimension_semantics<parallel>], iteration_bounds = array<i64: 1>, scalar_prefetch = 0 : i64, scratch_operands = 0 : i64, tpu.core_type = #tpu.core_type<tc>, window_params = [{transform_indices = @transform_0, window_bounds = array<i64: 8, 64>}, {pipeline_mode = #tpu.pipeline_mode<synchronous>, transform_indices = @transform_1, window_bounds = array<i64: 1, 64>}, {pipeline_mode = #tpu.pipeline_mode<synchronous>, transform_indices = @transform_2, window_bounds = array<i64: 64, 64>}, {pipeline_mode = #tpu.pipeline_mode<synchronous>, transform_indices = @transform_3, window_bounds = array<i64: 1, 64>}, {pipeline_mode = #tpu.pipeline_mode<synchronous>, transform_indices = @transform_4, window_bounds = array<i64: 64, 256>}, {pipeline_mode = #tpu.pipeline_mode<synchronous>, transform_indices = @transform_5, window_bounds = array<i64: 1, 256>}, {pipeline_mode = #tpu.pipeline_mode<synchronous>, transform_indices = @transform_6, window_bounds = array<i64: 256, 64>}, {pipeline_mode = #tpu.pipeline_mode<synchronous>, transform_indices = @transform_7, window_bounds = array<i64: 1, 64>}, {pipeline_mode = #tpu.pipeline_mode<synchronous>, transform_indices = @transform_8, window_bounds = array<i64: 64, 128>}, {pipeline_mode = #tpu.pipeline_mode<synchronous>, transform_indices = @transform_9, window_bounds = array<i64: 1, 128>}, {transform_indices = @transform_10, window_bounds = array<i64: 8, 128>}]} {
    %c0 = arith.constant 0 : index
    %c0_0 = arith.constant 0 : index
    %0 = vector.load %arg1[%c0, %c0_0] : memref<8x64xf32, #tpu.memory_space<vmem>>, vector<8x64xf32>
    %1 = arith.truncf %0 : vector<8x64xf32> to vector<8x64xbf16>
    %c0_1 = arith.constant 0 : index
    %c0_2 = arith.constant 0 : index
    %2 = vector.load %arg3[%c0_1, %c0_2] : memref<64x64xbf16, #tpu.memory_space<vmem>>, vector<64x64xbf16>
    %cst = arith.constant dense<0.000000e+00> : vector<8x64xf32>
    %3 = tpu.matmul %1, %2, %cst {dimension_numbers = #tpu.dot_dimension_numbers<[1], [0], [0], [1], [0, 0, 1, 1], [], []>} : vector<8x64xbf16>, vector<64x64xbf16>, vector<8x64xf32> -> vector<8x64xf32>
    %c0_3 = arith.constant 0 : index
    %c0_4 = arith.constant 0 : index
    %4 = vector.load %arg4[%c0_3, %c0_4] : memref<1x64xf32, #tpu.memory_space<vmem>>, vector<1x64xf32>
    %5 = vector.broadcast %4 : vector<1x64xf32> to vector<8x64xf32>
    %6 = arith.addf %3, %5 : vector<8x64xf32>
    %c0_5 = arith.constant 0 : index
    %c0_6 = arith.constant 0 : index
    %7 = vector.load %arg2[%c0_5, %c0_6] : memref<1x64xf32, #tpu.memory_space<vmem>>, vector<1x64xf32>
    %8 = vector.broadcast %7 : vector<1x64xf32> to vector<8x64xf32>
    %9 = arith.addf %8, %6 : vector<8x64xf32>
    %cst_7 = arith.constant dense<0.000000e+00> : vector<8xf32>
    %10 = vector.multi_reduction <add>, %9, %cst_7 [1] : vector<8x64xf32> to vector<8xf32>
    %11 = vector.shape_cast %10 : vector<8xf32> to vector<8x1xf32>
    %cst_8 = arith.constant 6.400000e+01 : f32
    %12 = vector.broadcast %cst_8 : f32 to vector<8x1xf32>
    %13 = arith.divf %11, %12 : vector<8x1xf32>
    %14 = vector.broadcast %13 : vector<8x1xf32> to vector<8x64xf32>
    %15 = arith.subf %9, %14 : vector<8x64xf32>
    %16 = arith.mulf %15, %15 : vector<8x64xf32>
    %cst_9 = arith.constant dense<0.000000e+00> : vector<8xf32>
    %17 = vector.multi_reduction <add>, %16, %cst_9 [1] : vector<8x64xf32> to vector<8xf32>
    %18 = vector.shape_cast %17 : vector<8xf32> to vector<8x1xf32>
    %cst_10 = arith.constant 6.400000e+01 : f32
    %19 = vector.broadcast %cst_10 : f32 to vector<8x1xf32>
    %20 = arith.divf %18, %19 : vector<8x1xf32>
    %21 = vector.broadcast %13 : vector<8x1xf32> to vector<8x64xf32>
    %22 = arith.subf %9, %21 : vector<8x64xf32>
    %cst_11 = arith.constant 9.99999974E-6 : f32
    %23 = vector.broadcast %cst_11 : f32 to vector<8x1xf32>
    %24 = arith.addf %20, %23 : vector<8x1xf32>
    %25 = math.rsqrt %24 : vector<8x1xf32>
    %26 = vector.broadcast %25 : vector<8x1xf32> to vector<8x64xf32>
    %27 = arith.mulf %22, %26 : vector<8x64xf32>
    %28 = arith.truncf %27 : vector<8x64xf32> to vector<8x64xbf16>
    %c0_12 = arith.constant 0 : index
    %c0_13 = arith.constant 0 : index
    %29 = vector.load %arg5[%c0_12, %c0_13] : memref<64x256xbf16, #tpu.memory_space<vmem>>, vector<64x256xbf16>
    %cst_14 = arith.constant dense<0.000000e+00> : vector<8x256xf32>
    %30 = tpu.matmul %28, %29, %cst_14 {dimension_numbers = #tpu.dot_dimension_numbers<[1], [0], [0], [1], [0, 0, 1, 1], [], []>} : vector<8x64xbf16>, vector<64x256xbf16>, vector<8x256xf32> -> vector<8x256xf32>
    %c0_15 = arith.constant 0 : index
    %c0_16 = arith.constant 0 : index
    %31 = vector.load %arg6[%c0_15, %c0_16] : memref<1x256xf32, #tpu.memory_space<vmem>>, vector<1x256xf32>
    %32 = vector.broadcast %31 : vector<1x256xf32> to vector<8x256xf32>
    %33 = arith.addf %30, %32 : vector<8x256xf32>
    %cst_17 = arith.constant 5.000000e-01 : f32
    %34 = vector.broadcast %cst_17 : f32 to vector<8x256xf32>
    %35 = arith.mulf %34, %33 : vector<8x256xf32>
    %cst_18 = arith.constant 0.707106769 : f32
    %36 = vector.broadcast %cst_18 : f32 to vector<8x256xf32>
    %37 = arith.mulf %33, %36 : vector<8x256xf32>
    %38 = math.erf %37 : vector<8x256xf32>
    %cst_19 = arith.constant 1.000000e+00 : f32
    %39 = vector.broadcast %cst_19 : f32 to vector<8x256xf32>
    %40 = arith.addf %39, %38 : vector<8x256xf32>
    %41 = arith.mulf %35, %40 : vector<8x256xf32>
    %42 = arith.truncf %41 : vector<8x256xf32> to vector<8x256xbf16>
    %c0_20 = arith.constant 0 : index
    %c0_21 = arith.constant 0 : index
    %43 = vector.load %arg7[%c0_20, %c0_21] : memref<256x64xbf16, #tpu.memory_space<vmem>>, vector<256x64xbf16>
    %cst_22 = arith.constant dense<0.000000e+00> : vector<8x64xf32>
    %44 = tpu.matmul %42, %43, %cst_22 {dimension_numbers = #tpu.dot_dimension_numbers<[1], [0], [0], [1], [0, 0, 1, 1], [], []>} : vector<8x256xbf16>, vector<256x64xbf16>, vector<8x64xf32> -> vector<8x64xf32>
    %c0_23 = arith.constant 0 : index
    %c0_24 = arith.constant 0 : index
    %45 = vector.load %arg8[%c0_23, %c0_24] : memref<1x64xf32, #tpu.memory_space<vmem>>, vector<1x64xf32>
    %46 = vector.broadcast %45 : vector<1x64xf32> to vector<8x64xf32>
    %47 = arith.addf %44, %46 : vector<8x64xf32>
    %48 = arith.addf %9, %47 : vector<8x64xf32>
    %49 = arith.truncf %48 : vector<8x64xf32> to vector<8x64xbf16>
    %c0_25 = arith.constant 0 : index
    %c0_26 = arith.constant 0 : index
    %50 = vector.load %arg9[%c0_25, %c0_26] : memref<64x128xbf16, #tpu.memory_space<vmem>>, vector<64x128xbf16>
    %cst_27 = arith.constant dense<0.000000e+00> : vector<8x128xf32>
    %51 = tpu.matmul %49, %50, %cst_27 {dimension_numbers = #tpu.dot_dimension_numbers<[1], [0], [0], [1], [0, 0, 1, 1], [], []>} : vector<8x64xbf16>, vector<64x128xbf16>, vector<8x128xf32> -> vector<8x128xf32>
    %c0_28 = arith.constant 0 : index
    %c0_29 = arith.constant 0 : index
    %52 = vector.load %arg10[%c0_28, %c0_29] : memref<1x128xf32, #tpu.memory_space<vmem>>, vector<1x128xf32>
    %53 = vector.broadcast %52 : vector<1x128xf32> to vector<8x128xf32>
    %54 = arith.addf %51, %53 : vector<8x128xf32>
    %c0_30 = arith.constant 0 : index
    %c0_31 = arith.constant 0 : index
    %55 = vector.load %arg11[%c0_30, %c0_31] : memref<8x128xf32, #tpu.memory_space<vmem>>, vector<8x128xf32>
    tpu.vector_store %arg11[%c0_30, %c0_31], %54 {strides = array<i32>} : memref<8x128xf32, #tpu.memory_space<vmem>>, vector<8x128xf32>,
    return
  }
  func.func @transform_0(%arg0: i32) -> (i32, i32) {
    %c0_i32 = arith.constant 0 : i32
    %c0_i32_0 = arith.constant 0 : i32
    return %arg0, %c0_i32 : i32, i32
  }
  func.func @transform_1(%arg0: i32) -> (i32, i32) {
    %c0_i32 = arith.constant 0 : i32
    %c0_i32_0 = arith.constant 0 : i32
    %c0_i32_1 = arith.constant 0 : i32
    return %c0_i32, %c0_i32_0 : i32, i32
  }
  func.func @transform_2(%arg0: i32) -> (i32, i32) {
    %c0_i32 = arith.constant 0 : i32
    %c0_i32_0 = arith.constant 0 : i32
    %c0_i32_1 = arith.constant 0 : i32
    return %c0_i32, %c0_i32_0 : i32, i32
  }
  func.func @transform_3(%arg0: i32) -> (i32, i32) {
    %c0_i32 = arith.constant 0 : i32
    %c0_i32_0 = arith.constant 0 : i32
    %c0_i32_1 = arith.constant 0 : i32
    return %c0_i32, %c0_i32_0 : i32, i32
  }
  func.func @transform_4(%arg0: i32) -> (i32, i32) {
    %c0_i32 = arith.constant 0 : i32
    %c0_i32_0 = arith.constant 0 : i32
    %c0_i32_1 = arith.constant 0 : i32
    return %c0_i32, %c0_i32_0 : i32, i32
  }
  func.func @transform_5(%arg0: i32) -> (i32, i32) {
    %c0_i32 = arith.constant 0 : i32
    %c0_i32_0 = arith.constant 0 : i32
    %c0_i32_1 = arith.constant 0 : i32
    return %c0_i32, %c0_i32_0 : i32, i32
  }
  func.func @transform_6(%arg0: i32) -> (i32, i32) {
    %c0_i32 = arith.constant 0 : i32
    %c0_i32_0 = arith.constant 0 : i32
    %c0_i32_1 = arith.constant 0 : i32
    return %c0_i32, %c0_i32_0 : i32, i32
  }
  func.func @transform_7(%arg0: i32) -> (i32, i32) {
    %c0_i32 = arith.constant 0 : i32
    %c0_i32_0 = arith.constant 0 : i32
    %c0_i32_1 = arith.constant 0 : i32
    return %c0_i32, %c0_i32_0 : i32, i32
  }
  func.func @transform_8(%arg0: i32) -> (i32, i32) {
    %c0_i32 = arith.constant 0 : i32
    %c0_i32_0 = arith.constant 0 : i32
    %c0_i32_1 = arith.constant 0 : i32
    return %c0_i32, %c0_i32_0 : i32, i32
  }
  func.func @transform_9(%arg0: i32) -> (i32, i32) {
    %c0_i32 = arith.constant 0 : i32
    %c0_i32_0 = arith.constant 0 : i32
    %c0_i32_1 = arith.constant 0 : i32
    return %c0_i32, %c0_i32_0 : i32, i32
  }
  func.func @transform_10(%arg0: i32) -> (i32, i32) {
    %c0_i32 = arith.constant 0 : i32
    %c0_i32_0 = arith.constant 0 : i32
    return %arg0, %c0_i32 : i32, i32
  }
}

</mosaic_0001>

<llo_original>
// kernel: tpu_custom_call.1
$region0: #{tpu_custom_call.1}
  #allocation0 [shape = 'u32[]', space=smem, size = 0x4, offset = 0x4, fixed_abs, tag = 'smem constant byte address 0x4 - core index']
  #allocation1 [shape = 'u32[144,128]{1,0:T(1,128)}', space=vmem, size = 0x12000, scoped, tag = 'internal scratch']
  %s0 = inlined_call_operand.hbm [shape: f32[8,128], index: 0, kind: input, shape index: {}]
  %s1 = inlined_call_operand.hbm [shape: f32[8,128], index: 1, kind: output, shape index: {}]
  %s2 = sld [smem:[#allocation0]]
  $region41: #{tpu_custom_call.1} parent=0
    _
  %s4 = ssub.s32 1, %s2
  %s5 = scalar_select 0, %s4, %s2
  $region1: #{tpu_custom_call.1} parent=0
    #allocation2 [shape = 'u8[4096]{0}', space=vmem, size = 0x1000, scoped, tag = 'input window, operand 0, single buffered']
    #allocation3 [shape = 's32[2]{0}', space=sflag, size = 0x8, scoped, tag = 'scoped memory for tpu_custom_call.1']
    #allocation4 [shape = 's32[2]{0}', space=sflag, size = 0x8, scoped, tag = 'scoped memory for tpu_custom_call.1']
    #allocation5 [shape = 'u8[4096]{0}', space=vmem, size = 0x1000, scoped, tag = 'output window, operand 0, single buffered']
    %6 = vsyncpa [#allocation3], 0
    %7 = vsyncpa [#allocation4], 0
    loop: start=0, step=1, limit=4
    $region2: #{tpu_custom_call.1} parent=1 // loop_pre_header
      _
    $region3: #{tpu_custom_call.1} parent=1 // loop_header
      %s9 = sphi 0, %s13
      %p10 = scmp.ge.s32.totalorder %s9, 4
      %s17 = sphi 0, %s17
      %s19 = sphi 0, %s17
      %s20 = sphi 0, %s19
      %s34 = sphi 0, %s20
      %s38 = sphi 0, %s38
      %s40 = sphi 0, %s38
      %s41 = sphi 0, %s40
      %s55 = sphi 0, %s41
    $region4: #{tpu_custom_call.1} parent=1 // loop_header_branch
      %12 = sbr.rel (%p10) target = $region8
    $region5: #{tpu_custom_call.1} parent=1 // loop_body
      %s14 = ssub.s32 %s9, 1
      %s15 = ssub.s32 %s9, 2
      %s16 = sadd.s32 %s9, 1
      %s18 = sadd.s32 %s17, 1
      %p21 = scmp.eq.s32.totalorder %s9, 1
      %p22 = scmp.ne.s32.totalorder %s17, %s19
      %p23 = scmp.eq.s32.totalorder %s9, 0
      %p24 = por %p22, %p23
      %p25 = scmp.ne.s32.totalorder %s17, %s19
      %p26 = scmp.eq.s32.totalorder %s14, 1
      %p27 = por %p25, %p26
      %p28 = scmp.ne.s32.totalorder %s19, %s20
      %p29 = scmp.eq.s32.totalorder %s14, 0
      %p30 = por %p28, %p29
      %p31 = scmp.ne.s32.totalorder %s19, %s20
      %p32 = scmp.eq.s32.totalorder %s15, 1
      %p33 = por %p31, %p32
      %p35 = scmp.ne.s32.totalorder %s20, %s34
      %p36 = scmp.eq.s32.totalorder %s15, 0
      %p37 = por %p35, %p36
      %s39 = sadd.s32 %s38, 1
      %p42 = scmp.eq.s32.totalorder %s9, 1
      %p43 = scmp.ne.s32.totalorder %s38, %s40
      %p44 = scmp.eq.s32.totalorder %s9, 0
      %p45 = por %p43, %p44
      %p46 = scmp.ne.s32.totalorder %s38, %s40
      %p47 = scmp.eq.s32.totalorder %s14, 1
      %p48 = por %p46, %p47
      %p49 = scmp.ne.s32.totalorder %s40, %s41
      %p50 = scmp.eq.s32.totalorder %s14, 0
      %p51 = por %p49, %p50
      %p52 = scmp.ne.s32.totalorder %s40, %s41
      %p53 = scmp.eq.s32.totalorder %s15, 1
      %p54 = por %p52, %p53
      %p56 = scmp.ne.s32.totalorder %s41, %s55
      %p57 = scmp.eq.s32.totalorder %s15, 0
      %p58 = por %p56, %p57
      %p59 = scmp.le.s32.totalorder 1, %s9
      %p60 = scmp.lt.s32.totalorder %s9, 3
      %p61 = pnand %p59, %p60
      %p62 = pneg %p61
      // Predicated region
      $region9: #{tpu_custom_call.1} parent=5 // pred_check
        _
      $region10: #{tpu_custom_call.1} parent=5 // pred_check_branch
        %64 = sbr.rel (%p61) target = $region12
      $region11: #{tpu_custom_call.1} parent=5 // pred_region
        %s65 = ssub.s32 %s9, 1
        // Predicated region
        $region13: #{tpu_custom_call.1} parent=11 // pred_check
          %p66 = pneg %p30
        $region14: #{tpu_custom_call.1} parent=11 // pred_check_branch
          %68 = sbr.rel (%p66) target = $region16
        $region15: #{tpu_custom_call.1} parent=11 // pred_region
          %s70 = ssub.s32 128, 128
          %71 = vsyncadd [#allocation3], %s70
          %s73 = sshll.u32 [#allocation2], 4
          %s74 = int_to_ptr.vmem [resolvable:$true] %s73
          %76 = dma.hbm_to_vmem [thread:$0]  %s0, 128, %s74, [#allocation3]
        $region16: #{tpu_custom_call.1} parent=11 // pred_fallthru
          _
      $region12: #{tpu_custom_call.1} parent=5 // pred_fallthru
        _
      %p77 = scmp.lt.s32.totalorder %s9, 2
      // Predicated region
      $region17: #{tpu_custom_call.1} parent=5 // pred_check
        %p78 = pneg %p77
      $region18: #{tpu_custom_call.1} parent=5 // pred_check_branch
        %80 = sbr.rel (%p78) target = $region20
      $region19: #{tpu_custom_call.1} parent=5 // pred_region
        _
      $region20: #{tpu_custom_call.1} parent=5 // pred_fallthru
        _
      %p81 = scmp.le.s32.totalorder 1, %s9
      %p82 = scmp.lt.s32.totalorder %s9, 3
      %p83 = pnand %p81, %p82
      %p84 = pneg %p83
      // Predicated region
      $region21: #{tpu_custom_call.1} parent=5 // pred_check
        _
      $region22: #{tpu_custom_call.1} parent=5 // pred_check_branch
        %86 = sbr.rel (%p83) target = $region24
      $region23: #{tpu_custom_call.1} parent=5 // pred_region
        %s87 = ssub.s32 %s9, 1
        // Predicated region
        $region25: #{tpu_custom_call.1} parent=23 // pred_check
          %p88 = pneg %p30
        $region26: #{tpu_custom_call.1} parent=23 // pred_check_branch
          %90 = sbr.rel (%p88) target = $region28
        $region27: #{tpu_custom_call.1} parent=23 // pred_region
          %91 = dma.done [#allocation3], 128
        $region28: #{tpu_custom_call.1} parent=23 // pred_fallthru
          _
        %p92 = pneg %p30
        %p93 = pneg %p27
        %p94 = pneg %p51
        %p95 = pneg %p48
        %v96 = vld [vmem:[#allocation2] sm:$0xff]
        %97 = vst [vmem:[#allocation5] sm:$0xff] %v96
        // Predicated region
        $region29: #{tpu_custom_call.1} parent=23 // pred_check
          %p98 = pneg %p48
        $region30: #{tpu_custom_call.1} parent=23 // pred_check_branch
          %100 = sbr.rel (%p98) target = $region32
        $region31: #{tpu_custom_call.1} parent=23 // pred_region
          %s102 = ssub.s32 128, 128
          %103 = vsyncadd [#allocation4], %s102
          %s105 = sshll.u32 [#allocation5], 4
          %s106 = int_to_ptr.vmem [resolvable:$true] %s105
          %108 = dma.vmem_to_hbm [thread:$0]  %s106, 128, %s1, [#allocation4]
        $region32: #{tpu_custom_call.1} parent=23 // pred_fallthru
          _
        // Predicated region
        $region33: #{tpu_custom_call.1} parent=23 // pred_check
          %p109 = pneg %p48
        $region34: #{tpu_custom_call.1} parent=23 // pred_check_branch
          %111 = sbr.rel (%p109) target = $region36
        $region35: #{tpu_custom_call.1} parent=23 // pred_region
          %112 = dma.done [#allocation4], 128
        $region36: #{tpu_custom_call.1} parent=23 // pred_fallthru
          _
      $region24: #{tpu_custom_call.1} parent=5 // pred_fallthru
        _
      %p113 = scmp.le.s32.totalorder 2, %s9
      // Predicated region
      $region37: #{tpu_custom_call.1} parent=5 // pred_check
        %p114 = pneg %p113
      $region38: #{tpu_custom_call.1} parent=5 // pred_check_branch
        %116 = sbr.rel (%p114) target = $region40
      $region39: #{tpu_custom_call.1} parent=5 // pred_region
        %s117 = ssub.s32 %s9, 2
      $region40: #{tpu_custom_call.1} parent=5 // pred_fallthru
        _
    $region6: #{tpu_custom_call.1} parent=1 // loop_footer
      %s13 = sadd.s32 1, %s9
    $region7: #{tpu_custom_call.1} parent=1 // loop_footer_branch
      %8 = sbr.rel target = $region3
    $region8: #{tpu_custom_call.1} parent=1 // loop_exit
      _
    %118 = vsyncpa [#allocation3], 1
    %s119 = scalar_lea.sflag [#allocation3], 1
    %120 = vsyncpa %s119, 1
    %121 = vsyncpa [#allocation4], 1
    %s122 = scalar_lea.sflag [#allocation4], 1
    %123 = vsyncpa %s122, 1

// kernel: _forward.3
$region0: #{_forward.3}
  #allocation0 [shape = 'u32[]', space=smem, size = 0x4, offset = 0x4, fixed_abs, tag = 'smem constant byte address 0x4 - core index']
  #allocation1 [shape = 'u32[144,128]{1,0:T(1,128)}', space=vmem, size = 0x12000, scoped, tag = 'internal scratch']
  %s0 = inlined_call_operand.vmem [shape: f32[8,64], index: 0, kind: input, shape index: {}]
  %s1 = inlined_call_operand.vmem [shape: f32[1,64], index: 1, kind: input, shape index: {}]
  %s2 = inlined_call_operand.vmem [shape: bf16[64,64], index: 2, kind: input, shape index: {}]
  %s3 = inlined_call_operand.vmem [shape: f32[1,64], index: 3, kind: input, shape index: {}]
  %s4 = inlined_call_operand.vmem [shape: bf16[64,256], index: 4, kind: input, shape index: {}]
  %s5 = inlined_call_operand.vmem [shape: f32[1,256], index: 5, kind: input, shape index: {}]
  %s6 = inlined_call_operand.vmem [shape: bf16[256,64], index: 6, kind: input, shape index: {}]
  %s7 = inlined_call_operand.vmem [shape: f32[1,64], index: 7, kind: input, shape index: {}]
  %s8 = inlined_call_operand.vmem [shape: bf16[64,128], index: 8, kind: input, shape index: {}]
  %s9 = inlined_call_operand.vmem [shape: f32[1,128], index: 9, kind: input, shape index: {}]
  %s10 = inlined_call_operand.vmem [shape: f32[8,128], index: 10, kind: output, shape index: {}]
  %s11 = sld [smem:[#allocation0]]
  $region50: #{_forward.3} parent=0
    _
  %s13 = ssub.s32 1, %s11
  %s14 = scalar_select 0, %s13, %s11
  // Predicated region
  $region2: #{_forward.3} parent=0 // pred_check
    _
  $region3: #{_forward.3} parent=0 // pred_check_branch
    %16 = sbr.rel (0) target = $region5
  $region4: #{_forward.3} parent=0 // pred_region
    _
  $region5: #{_forward.3} parent=0 // pred_fallthru
    _
  // Predicated region
  $region6: #{_forward.3} parent=0 // pred_check
    _
  $region7: #{_forward.3} parent=0 // pred_check_branch
    %18 = sbr.rel (0) target = $region9
  $region8: #{_forward.3} parent=0 // pred_region
    _
  $region9: #{_forward.3} parent=0 // pred_fallthru
    _
  // Predicated region
  $region10: #{_forward.3} parent=0 // pred_check
    _
  $region11: #{_forward.3} parent=0 // pred_check_branch
    %20 = sbr.rel (0) target = $region13
  $region12: #{_forward.3} parent=0 // pred_region
    _
  $region13: #{_forward.3} parent=0 // pred_fallthru
    _
  // Predicated region
  $region14: #{_forward.3} parent=0 // pred_check
    _
  $region15: #{_forward.3} parent=0 // pred_check_branch
    %22 = sbr.rel (0) target = $region17
  $region16: #{_forward.3} parent=0 // pred_region
    _
  $region17: #{_forward.3} parent=0 // pred_fallthru
    _
  // Predicated region
  $region18: #{_forward.3} parent=0 // pred_check
    _
  $region19: #{_forward.3} parent=0 // pred_check_branch
    %24 = sbr.rel (0) target = $region21
  $region20: #{_forward.3} parent=0 // pred_region
    _
  $region21: #{_forward.3} parent=0 // pred_fallthru
    _
  // Predicated region
  $region22: #{_forward.3} parent=0 // pred_check
    _
  $region23: #{_forward.3} parent=0 // pred_check_branch
    %26 = sbr.rel (0) target = $region25
  $region24: #{_forward.3} parent=0 // pred_region
    _
  $region25: #{_forward.3} parent=0 // pred_fallthru
    _
  // Predicated region
  $region26: #{_forward.3} parent=0 // pred_check
    _
  $region27: #{_forward.3} parent=0 // pred_check_branch
    %28 = sbr.rel (0) target = $region29
  $region28: #{_forward.3} parent=0 // pred_region
    _
  $region29: #{_forward.3} parent=0 // pred_fallthru
    _
  // Predicated region
  $region30: #{_forward.3} parent=0 // pred_check
    _
  $region31: #{_forward.3} parent=0 // pred_check_branch
    %30 = sbr.rel (0) target = $region33
  $region32: #{_forward.3} parent=0 // pred_region
    _
  $region33: #{_forward.3} parent=0 // pred_fallthru
    _
  // Predicated region
  $region34: #{_forward.3} parent=0 // pred_check
    _
  $region35: #{_forward.3} parent=0 // pred_check_branch
    %32 = sbr.rel (0) target = $region37
  $region36: #{_forward.3} parent=0 // pred_region
    _
  $region37: #{_forward.3} parent=0 // pred_fallthru
    _
  // Predicated region
  $region38: #{_forward.3} parent=0 // pred_check
    _
  $region39: #{_forward.3} parent=0 // pred_check_branch
    %34 = sbr.rel (0) target = $region41
  $region40: #{_forward.3} parent=0 // pred_region
    _
  $region41: #{_forward.3} parent=0 // pred_fallthru
    _
  %v36 = vld [vmem:[%s0] sm:$0xff]
  %v37 = vpack.c.bf16 %v36, %v36
  %v38 = vld [vmem:[%s2] sm:$0xf]
  %v39 = vld [vmem:[%s2 + $0x4] sm:$0xf]
  %v40 = vld [vmem:[%s2 + $0x8] sm:$0xf]
  %v41 = vld [vmem:[%s2 + $0xc] sm:$0xf]
  %v42 = vld [vmem:[%s2 + $0x10] sm:$0xf]
  %v43 = vld [vmem:[%s2 + $0x14] sm:$0xf]
  %v44 = vld [vmem:[%s2 + $0x18] sm:$0xf]
  %v45 = vld [vmem:[%s2 + $0x1c] sm:$0xf]
  %v46 = vld [vmem:[%s3] sm:$0x1]
  %v48 = vlaneseq
  %v49 = vshrl.u32 %v48, 7
  %v50 = vsub.s32 0, %v49
  %v51 = vrot.slane %v46, %v50
  %v61 = vunpack.c.l.b16 %v38
  %v62 = vunpack.c.l.b16 %v39
  %v63 = vunpack.c.l.b16 %v40
  %v64 = vunpack.c.l.b16 %v41
  %v65 = vunpack.c.l.b16 %v42
  %v66 = vunpack.c.l.b16 %v43
  %v67 = vunpack.c.l.b16 %v44
  %v68 = vunpack.c.l.b16 %v45
  %v69 = vpack.c.b16 %v62, %v61
  %v70 = vpack.c.b16 %v64, %v63
  %v71 = vpack.c.b16 %v66, %v65
  %v72 = vpack.c.b16 %v68, %v67
  %vm77 = vcmask 523264
  %v79 = vsel %vm77, %v37, 0
  %81 = vmatprep.subr.bf16.mxu0 0
  %82 = vmatpush1.bf16.msra.mxu0 0
  %83 = vmatprep.subr.bf16.mxu0 0
  %84 = vmatpush1.bf16.msra.mxu0 0
  %85 = vmatprep.subr.bf16.mxu0 0
  %86 = vmatpush1.bf16.msra.mxu0 0
  %87 = vmatprep.subr.bf16.mxu0 0
  %88 = vmatpush1.bf16.msra.mxu0 0
  %89 = vmatprep.subr.bf16.mxu0 0
  %90 = vmatpush1.bf16.msra.mxu0 %v72
  %91 = vmatprep.subr.bf16.mxu0 0
  %92 = vmatpush1.bf16.msra.mxu0 %v71
  %93 = vmatprep.subr.bf16.mxu0 0
  %94 = vmatpush1.bf16.msra.mxu0 %v70
  %95 = vmatprep.subr.bf16.mxu0 0
  %96 = vmatpush1.bf16.msra.mxu0 %v69
  %97 = vmatprep.subr.bf16.mxu0 0
  %98 = vmatpush2.bf16.msra.mxu0 0
  %99 = vmatprep.subr.bf16.mxu0 0
  %100 = vmatpush2.bf16.msra.mxu0 0
  %101 = vmatprep.subr.bf16.mxu0 0
  %102 = vmatpush2.bf16.msra.mxu0 0
  %103 = vmatprep.subr.bf16.mxu0 0
  %104 = vmatpush2.bf16.msra.mxu0 0
  %105 = vmatprep.subr.bf16.mxu0 0
  %106 = vmatpush2.bf16.msra.mxu0 0
  %107 = vmatprep.subr.bf16.mxu0 0
  %108 = vmatpush2.bf16.msra.mxu0 0
  %109 = vmatprep.subr.bf16.mxu0 0
  %110 = vmatpush2.bf16.msra.mxu0 0
  %111 = vmatprep.subr.bf16.mxu0 0
  %112 = vmatpush2.bf16.msra.mxu0 0
  %113 = vmatprep.mubr.bf16.mxu0 0
  %114 = vmatmul.mubr.bf16.gmra.mxu0 %v79
  %v115 = vpop.f32.mrf.mxu0
  %v116 = vadd.f32 %v51, %v115
  %v117 = vpop.f32.mrf.mxu0
  %v118 = vpop.f32.mrf.mxu0
  %v119 = vpop.f32.mrf.mxu0
  %120 = vdwg.mxu0
  %v121 = vld [vmem:[%s1] sm:$0x1]
  %v123 = vlaneseq
  %v124 = vshrl.u32 %v123, 7
  %v125 = vsub.s32 0, %v124
  %v126 = vrot.slane %v121, %v125
  %v128 = vadd.f32 %v126, %v116
  %v129 = vsel %vm77, %v128, 0.0
  %130 = vadd.xlane.f32.xlu0 %v129
  %v131 = vpop.xlane.xlu0 %130
  %v132 = vrcp.pop 64.0
  %v133 = vmul.f32 %v131, %v132
  %v134 = vsub.f32 %v128, %v133
  %v135 = vmul.f32 %v134, %v134
  %v136 = vsel %vm77, %v135, 0.0
  %137 = vadd.xlane.f32.xlu0 %v136
  %v138 = vpop.xlane.xlu0 %137
  %v139 = vmul.f32 %v138, %v132
  %v140 = vadd.f32 %v139, 1e-05
  %v141 = vrsqrt.pop %v140
  %v142 = vmul.f32 %v134, %v141
  %v143 = vpack.c.bf16 %v142, %v142
  %v144 = vld [vmem:[%s4] sm:$0xff]
  %v145 = vld [vmem:[%s4 + $0x8] sm:$0xff]
  %v146 = vld [vmem:[%s4 + $0x10] sm:$0xff]
  %v147 = vld [vmem:[%s4 + $0x18] sm:$0xff]
  %v148 = vld [vmem:[%s4 + $0x20] sm:$0xff]
  %v149 = vld [vmem:[%s4 + $0x28] sm:$0xff]
  %v150 = vld [vmem:[%s4 + $0x30] sm:$0xff]
  %v151 = vld [vmem:[%s4 + $0x38] sm:$0xff]
  %v152 = vld [vmem:[%s5] sm:$0x3]
  %v154 = vlaneseq
  %v155 = vshrl.u32 %v154, 7
  %v156 = vsub.s32 0, %v155
  %v157 = vrot.slane %v152, %v156
  %v158 = vlaneseq
  %v159 = vshrl.u32 %v158, 7
  %v160 = vsub.s32 1, %v159
  %v161 = vrot.slane %v152, %v160
  %v172 = vunpack.c.l.b16 %v144
  %v173 = vunpack.c.h.b16 %v144
  %v174 = vunpack.c.l.b16 %v145
  %v175 = vunpack.c.h.b16 %v145
  %v176 = vunpack.c.l.b16 %v146
  %v177 = vunpack.c.h.b16 %v146
  %v178 = vunpack.c.l.b16 %v147
  %v179 = vunpack.c.h.b16 %v147
  %v180 = vunpack.c.l.b16 %v148
  %v181 = vunpack.c.h.b16 %v148
  %v182 = vunpack.c.l.b16 %v149
  %v183 = vunpack.c.h.b16 %v149
  %v184 = vunpack.c.l.b16 %v150
  %v185 = vunpack.c.h.b16 %v150
  %v186 = vunpack.c.l.b16 %v151
  %v187 = vunpack.c.h.b16 %v151
  %v188 = vpack.c.b16 %v174, %v172
  %v189 = vpack.c.b16 %v175, %v173
  %v190 = vpack.c.b16 %v178, %v176
  %v191 = vpack.c.b16 %v179, %v177
  %v192 = vpack.c.b16 %v182, %v180
  %v193 = vpack.c.b16 %v183, %v181
  %v194 = vpack.c.b16 %v186, %v184
  %v195 = vpack.c.b16 %v187, %v185
  %v205 = vsel %vm77, %v143, 0
  %207 = vmatprep.subr.bf16.mxu0 0
  %208 = vmatpush1.bf16.msra.mxu0 0
  %209 = vmatprep.subr.bf16.mxu0 0
  %210 = vmatpush1.bf16.msra.mxu0 0
  %211 = vmatprep.subr.bf16.mxu0 0
  %212 = vmatpush1.bf16.msra.mxu0 0
  %213 = vmatprep.subr.bf16.mxu0 0
  %214 = vmatpush1.bf16.msra.mxu0 0
  %215 = vmatprep.subr.bf16.mxu0 %v195
  %216 = vmatpush1.bf16.msra.mxu0 %v194
  %217 = vmatprep.subr.bf16.mxu0 %v193
  %218 = vmatpush1.bf16.msra.mxu0 %v192
  %219 = vmatprep.subr.bf16.mxu0 %v191
  %220 = vmatpush1.bf16.msra.mxu0 %v190
  %221 = vmatprep.subr.bf16.mxu0 %v189
  %222 = vmatpush1.bf16.msra.mxu0 %v188
  %223 = vmatprep.subr.bf16.mxu0 0
  %224 = vmatpush2.bf16.msra.mxu0 0
  %225 = vmatprep.subr.bf16.mxu0 0
  %226 = vmatpush2.bf16.msra.mxu0 0
  %227 = vmatprep.subr.bf16.mxu0 0
  %228 = vmatpush2.bf16.msra.mxu0 0
  %229 = vmatprep.subr.bf16.mxu0 0
  %230 = vmatpush2.bf16.msra.mxu0 0
  %231 = vmatprep.subr.bf16.mxu0 0
  %232 = vmatpush2.bf16.msra.mxu0 0
  %233 = vmatprep.subr.bf16.mxu0 0
  %234 = vmatpush2.bf16.msra.mxu0 0
  %235 = vmatprep.subr.bf16.mxu0 0
  %236 = vmatpush2.bf16.msra.mxu0 0
  %237 = vmatprep.subr.bf16.mxu0 0
  %238 = vmatpush2.bf16.msra.mxu0 0
  %239 = vmatprep.mubr.bf16.mxu0 0
  %240 = vmatmul.mubr.bf16.gmra.mxu0 %v205
  %v241 = vpop.f32.mrf.mxu0
  %v242 = vadd.f32 %v157, %v241
  %v243 = vpop.f32.mrf.mxu0
  %v244 = vadd.f32 %v161, %v243
  %v245 = vpop.f32.mrf.mxu0
  %v246 = vpop.f32.mrf.mxu0
  %247 = vdwg.mxu0
  %v248 = vmul.f32 %v242, 0.5
  %v249 = vmul.f32 %v244, 0.5
  %v250 = vmul.f32 %v242, 0.70710677
  %v251 = vmul.f32 %v244, 0.70710677
  %v252 = verf.f32.pop %v250
  %v253 = verf.f32.pop %v251
  %v254 = vadd.f32 %v252, 1.0
  %v255 = vadd.f32 %v253, 1.0
  %v256 = vmul.f32 %v248, %v254
  %v257 = vmul.f32 %v249, %v255
  %v258 = vpack.c.bf16 %v256, %v256
  %v259 = vpack.c.bf16 %v257, %v257
  %v260 = vld [vmem:[%s6] sm:$0xf]
  %v261 = vld [vmem:[%s6 + $0x4] sm:$0xf]
  %v262 = vld [vmem:[%s6 + $0x8] sm:$0xf]
  %v263 = vld [vmem:[%s6 + $0xc] sm:$0xf]
  %v264 = vld [vmem:[%s6 + $0x10] sm:$0xf]
  %v265 = vld [vmem:[%s6 + $0x14] sm:$0xf]
  %v266 = vld [vmem:[%s6 + $0x18] sm:$0xf]
  %v267 = vld [vmem:[%s6 + $0x1c] sm:$0xf]
  %v268 = vld [vmem:[%s6 + $0x20] sm:$0xf]
  %v269 = vld [vmem:[%s6 + $0x24] sm:$0xf]
  %v270 = vld [vmem:[%s6 + $0x28] sm:$0xf]
  %v271 = vld [vmem:[%s6 + $0x2c] sm:$0xf]
  %v272 = vld [vmem:[%s6 + $0x30] sm:$0xf]
  %v273 = vld [vmem:[%s6 + $0x34] sm:$0xf]
  %v274 = vld [vmem:[%s6 + $0x38] sm:$0xf]
  %v275 = vld [vmem:[%s6 + $0x3c] sm:$0xf]
  %v276 = vld [vmem:[%s6 + $0x40] sm:$0xf]
  %v277 = vld [vmem:[%s6 + $0x44] sm:$0xf]
  %v278 = vld [vmem:[%s6 + $0x48] sm:$0xf]
  %v279 = vld [vmem:[%s6 + $0x4c] sm:$0xf]
  %v280 = vld [vmem:[%s6 + $0x50] sm:$0xf]
  %v281 = vld [vmem:[%s6 + $0x54] sm:$0xf]
  %v282 = vld [vmem:[%s6 + $0x58] sm:$0xf]
  %v283 = vld [vmem:[%s6 + $0x5c] sm:$0xf]
  %v284 = vld [vmem:[%s6 + $0x60] sm:$0xf]
  %v285 = vld [vmem:[%s6 + $0x64] sm:$0xf]
  %v286 = vld [vmem:[%s6 + $0x68] sm:$0xf]
  %v287 = vld [vmem:[%s6 + $0x6c] sm:$0xf]
  %v288 = vld [vmem:[%s6 + $0x70] sm:$0xf]
  %v289 = vld [vmem:[%s6 + $0x74] sm:$0xf]
  %v290 = vld [vmem:[%s6 + $0x78] sm:$0xf]
  %v291 = vld [vmem:[%s6 + $0x7c] sm:$0xf]
  %v292 = vld [vmem:[%s7] sm:$0x1]
  %v294 = vlaneseq
  %v295 = vshrl.u32 %v294, 7
  %v296 = vsub.s32 0, %v295
  %v297 = vrot.slane %v292, %v296
  %v331 = vunpack.c.l.b16 %v260
  %v332 = vunpack.c.l.b16 %v261
  %v333 = vunpack.c.l.b16 %v262
  %v334 = vunpack.c.l.b16 %v263
  %v335 = vunpack.c.l.b16 %v264
  %v336 = vunpack.c.l.b16 %v265
  %v337 = vunpack.c.l.b16 %v266
  %v338 = vunpack.c.l.b16 %v267
  %v339 = vunpack.c.l.b16 %v268
  %v340 = vunpack.c.l.b16 %v269
  %v341 = vunpack.c.l.b16 %v270
  %v342 = vunpack.c.l.b16 %v271
  %v343 = vunpack.c.l.b16 %v272
  %v344 = vunpack.c.l.b16 %v273
  %v345 = vunpack.c.l.b16 %v274
  %v346 = vunpack.c.l.b16 %v275
  %v347 = vunpack.c.l.b16 %v276
  %v348 = vunpack.c.l.b16 %v277
  %v349 = vunpack.c.l.b16 %v278
  %v350 = vunpack.c.l.b16 %v279
  %v351 = vunpack.c.l.b16 %v280
  %v352 = vunpack.c.l.b16 %v281
  %v353 = vunpack.c.l.b16 %v282
  %v354 = vunpack.c.l.b16 %v283
  %v355 = vunpack.c.l.b16 %v284
  %v356 = vunpack.c.l.b16 %v285
  %v357 = vunpack.c.l.b16 %v286
  %v358 = vunpack.c.l.b16 %v287
  %v359 = vunpack.c.l.b16 %v288
  %v360 = vunpack.c.l.b16 %v289
  %v361 = vunpack.c.l.b16 %v290
  %v362 = vunpack.c.l.b16 %v291
  %v363 = vpack.c.b16 %v332, %v331
  %v364 = vpack.c.b16 %v334, %v333
  %v365 = vpack.c.b16 %v336, %v335
  %v366 = vpack.c.b16 %v338, %v337
  %v367 = vpack.c.b16 %v340, %v339
  %v368 = vpack.c.b16 %v342, %v341
  %v369 = vpack.c.b16 %v344, %v343
  %v370 = vpack.c.b16 %v346, %v345
  %v371 = vpack.c.b16 %v348, %v347
  %v372 = vpack.c.b16 %v350, %v349
  %v373 = vpack.c.b16 %v352, %v351
  %v374 = vpack.c.b16 %v354, %v353
  %v375 = vpack.c.b16 %v356, %v355
  %v376 = vpack.c.b16 %v358, %v357
  %v377 = vpack.c.b16 %v360, %v359
  %v378 = vpack.c.b16 %v362, %v361
  %395 = vmatprep.subr.bf16.mxu0 0
  %396 = vmatpush1.bf16.msra.mxu0 %v370
  %397 = vmatprep.subr.bf16.mxu0 0
  %398 = vmatpush1.bf16.msra.mxu0 %v369
  %399 = vmatprep.subr.bf16.mxu0 0
  %400 = vmatpush1.bf16.msra.mxu0 %v368
  %401 = vmatprep.subr.bf16.mxu0 0
  %402 = vmatpush1.bf16.msra.mxu0 %v367
  %403 = vmatprep.subr.bf16.mxu0 0
  %404 = vmatpush1.bf16.msra.mxu0 %v366
  %405 = vmatprep.subr.bf16.mxu0 0
  %406 = vmatpush1.bf16.msra.mxu0 %v365
  %407 = vmatprep.subr.bf16.mxu0 0
  %408 = vmatpush1.bf16.msra.mxu0 %v364
  %409 = vmatprep.subr.bf16.mxu0 0
  %410 = vmatpush1.bf16.msra.mxu0 %v363
  %411 = vmatprep.subr.bf16.mxu0 0
  %412 = vmatpush2.bf16.msra.mxu0 %v378
  %413 = vmatprep.subr.bf16.mxu0 0
  %414 = vmatpush2.bf16.msra.mxu0 %v377
  %415 = vmatprep.subr.bf16.mxu0 0
  %416 = vmatpush2.bf16.msra.mxu0 %v376
  %417 = vmatprep.subr.bf16.mxu0 0
  %418 = vmatpush2.bf16.msra.mxu0 %v375
  %419 = vmatprep.subr.bf16.mxu0 0
  %420 = vmatpush2.bf16.msra.mxu0 %v374
  %421 = vmatprep.subr.bf16.mxu0 0
  %422 = vmatpush2.bf16.msra.mxu0 %v373
  %423 = vmatprep.subr.bf16.mxu0 0
  %424 = vmatpush2.bf16.msra.mxu0 %v372
  %425 = vmatprep.subr.bf16.mxu0 0
  %426 = vmatpush2.bf16.msra.mxu0 %v371
  %427 = vmatprep.mubr.bf16.mxu0 %v259
  %428 = vmatmul.mubr.bf16.gmra.mxu0 %v258
  %v429 = vpop.f32.mrf.mxu0
  %v430 = vadd.f32 %v297, %v429
  %v431 = vpop.f32.mrf.mxu0
  %v432 = vpop.f32.mrf.mxu0
  %v433 = vpop.f32.mrf.mxu0
  %434 = vdwg.mxu0
  %v435 = vadd.f32 %v128, %v430
  %v436 = vpack.c.bf16 %v435, %v435
  %v437 = vld [vmem:[%s8] sm:$0xf]
  %v438 = vld [vmem:[%s8 + $0x4] sm:$0xf]
  %v439 = vld [vmem:[%s8 + $0x8] sm:$0xf]
  %v440 = vld [vmem:[%s8 + $0xc] sm:$0xf]
  %v441 = vld [vmem:[%s8 + $0x10] sm:$0xf]
  %v442 = vld [vmem:[%s8 + $0x14] sm:$0xf]
  %v443 = vld [vmem:[%s8 + $0x18] sm:$0xf]
  %v444 = vld [vmem:[%s8 + $0x1c] sm:$0xf]
  %v445 = vld [vmem:[%s9] sm:$0x1]
  %v447 = vlaneseq
  %v448 = vshrl.u32 %v447, 7
  %v449 = vsub.s32 0, %v448
  %v450 = vrot.slane %v445, %v449
  %v460 = vunpack.c.l.b16 %v437
  %v461 = vunpack.c.l.b16 %v438
  %v462 = vunpack.c.l.b16 %v439
  %v463 = vunpack.c.l.b16 %v440
  %v464 = vunpack.c.l.b16 %v441
  %v465 = vunpack.c.l.b16 %v442
  %v466 = vunpack.c.l.b16 %v443
  %v467 = vunpack.c.l.b16 %v444
  %v468 = vpack.c.b16 %v461, %v460
  %v469 = vpack.c.b16 %v463, %v462
  %v470 = vpack.c.b16 %v465, %v464
  %v471 = vpack.c.b16 %v467, %v466
  %v477 = vsel %vm77, %v436, 0
  %479 = vmatprep.subr.bf16.mxu0 0
  %480 = vmatpush1.bf16.msra.mxu0 0
  %481 = vmatprep.subr.bf16.mxu0 0
  %482 = vmatpush1.bf16.msra.mxu0 0
  %483 = vmatprep.subr.bf16.mxu0 0
  %484 = vmatpush1.bf16.msra.mxu0 0
  %485 = vmatprep.subr.bf16.mxu0 0
  %486 = vmatpush1.bf16.msra.mxu0 0
  %487 = vmatprep.subr.bf16.mxu0 0
  %488 = vmatpush1.bf16.msra.mxu0 %v471
  %489 = vmatprep.subr.bf16.mxu0 0
  %490 = vmatpush1.bf16.msra.mxu0 %v470
  %491 = vmatprep.subr.bf16.mxu0 0
  %492 = vmatpush1.bf16.msra.mxu0 %v469
  %493 = vmatprep.subr.bf16.mxu0 0
  %494 = vmatpush1.bf16.msra.mxu0 %v468
  %495 = vmatprep.subr.bf16.mxu0 0
  %496 = vmatpush2.bf16.msra.mxu0 0
  %497 = vmatprep.subr.bf16.mxu0 0
  %498 = vmatpush2.bf16.msra.mxu0 0
  %499 = vmatprep.subr.bf16.mxu0 0
  %500 = vmatpush2.bf16.msra.mxu0 0
  %501 = vmatprep.subr.bf16.mxu0 0
  %502 = vmatpush2.bf16.msra.mxu0 0
  %503 = vmatprep.subr.bf16.mxu0 0
  %504 = vmatpush2.bf16.msra.mxu0 0
  %505 = vmatprep.subr.bf16.mxu0 0
  %506 = vmatpush2.bf16.msra.mxu0 0
  %507 = vmatprep.subr.bf16.mxu0 0
  %508 = vmatpush2.bf16.msra.mxu0 0
  %509 = vmatprep.subr.bf16.mxu0 0
  %510 = vmatpush2.bf16.msra.mxu0 0
  %511 = vmatprep.mubr.bf16.mxu0 0
  %512 = vmatmul.mubr.bf16.gmra.mxu0 %v477
  %v513 = vpop.f32.mrf.mxu0
  %v514 = vadd.f32 %v450, %v513
  %v515 = vpop.f32.mrf.mxu0
  %v516 = vpop.f32.mrf.mxu0
  %v517 = vpop.f32.mrf.mxu0
  %518 = vdwg.mxu0
  %519 = vst [vmem:[%s10] sm:$0xff] %v514
  // Predicated region
  $region42: #{_forward.3} parent=0 // pred_check
    _
  $region43: #{_forward.3} parent=0 // pred_check_branch
    %521 = sbr.rel (0) target = $region45
  $region44: #{_forward.3} parent=0 // pred_region
    _
  $region45: #{_forward.3} parent=0 // pred_fallthru
    _
  // Predicated region
  $region46: #{_forward.3} parent=0 // pred_check
    _
  $region47: #{_forward.3} parent=0 // pred_check_branch
    %523 = sbr.rel (0) target = $region49
  $region48: #{_forward.3} parent=0 // pred_region
    _
  $region49: #{_forward.3} parent=0 // pred_fallthru
    _

// kernel: _forward.2
$region0: #{_forward.2}
  #allocation0 [shape = 'u32[]', space=smem, size = 0x4, offset = 0x4, fixed_abs, tag = 'smem constant byte address 0x4 - core index']
  #allocation1 [shape = 'u32[144,128]{1,0:T(1,128)}', space=vmem, size = 0x12000, scoped, tag = 'internal scratch']
  #allocation2 [shape = 'f32[8,128]{1,0:T(8,128)}', space=vmem, size = 0x1000, scoped, tag = 'scratch operand']
  #allocation3 [shape = 'f32[8,128]{1,0:T(8,128)}', space=vmem, size = 0x1000, scoped, tag = 'scratch operand']
  #allocation4 [shape = 'f32[8,64]{1,0:T(8,128)}', space=vmem, size = 0x1000, scoped, tag = 'scratch operand']
  %s0 = inlined_call_operand.vmem [shape: bf16[8,8,64], index: 0, kind: input, shape index: {}]
  %s1 = inlined_call_operand.vmem [shape: bf16[64,64], index: 1, kind: input, shape index: {}]
  %s2 = inlined_call_operand.vmem [shape: f32[1,64], index: 2, kind: input, shape index: {}]
  %s3 = inlined_call_operand.vmem [shape: bf16[64,128], index: 3, kind: input, shape index: {}]
  %s4 = inlined_call_operand.vmem [shape: f32[1,128], index: 4, kind: input, shape index: {}]
  %s5 = inlined_call_operand.vmem [shape: bf16[128,64], index: 5, kind: input, shape index: {}]
  %s6 = inlined_call_operand.vmem [shape: f32[128,64], index: 6, kind: input, shape index: {}]
  %s7 = inlined_call_operand.vmem [shape: f32[8,64], index: 7, kind: output, shape index: {}]
  %s8 = sld [smem:[#allocation0]]
  $region46: #{_forward.2} parent=0
    _
  %s10 = ssub.s32 1, %s8
  %s11 = scalar_select 0, %s10, %s8
  // Predicated region
  $region2: #{_forward.2} parent=0 // pred_check
    _
  $region3: #{_forward.2} parent=0 // pred_check_branch
    %13 = sbr.rel (0) target = $region5
  $region4: #{_forward.2} parent=0 // pred_region
    _
  $region5: #{_forward.2} parent=0 // pred_fallthru
    _
  // Predicated region
  $region6: #{_forward.2} parent=0 // pred_check
    _
  $region7: #{_forward.2} parent=0 // pred_check_branch
    %15 = sbr.rel (0) target = $region9
  $region8: #{_forward.2} parent=0 // pred_region
    _
  $region9: #{_forward.2} parent=0 // pred_fallthru
    _
  // Predicated region
  $region10: #{_forward.2} parent=0 // pred_check
    _
  $region11: #{_forward.2} parent=0 // pred_check_branch
    %17 = sbr.rel (0) target = $region13
  $region12: #{_forward.2} parent=0 // pred_region
    _
  $region13: #{_forward.2} parent=0 // pred_fallthru
    _
  // Predicated region
  $region14: #{_forward.2} parent=0 // pred_check
    _
  $region15: #{_forward.2} parent=0 // pred_check_branch
    %19 = sbr.rel (0) target = $region17
  $region16: #{_forward.2} parent=0 // pred_region
    _
  $region17: #{_forward.2} parent=0 // pred_fallthru
    _
  // Predicated region
  $region18: #{_forward.2} parent=0 // pred_check
    _
  $region19: #{_forward.2} parent=0 // pred_check_branch
    %21 = sbr.rel (0) target = $region21
  $region20: #{_forward.2} parent=0 // pred_region
    _
  $region21: #{_forward.2} parent=0 // pred_fallthru
    _
  // Predicated region
  $region22: #{_forward.2} parent=0 // pred_check
    _
  $region23: #{_forward.2} parent=0 // pred_check_branch
    %23 = sbr.rel (0) target = $region25
  $region24: #{_forward.2} parent=0 // pred_region
    _
  $region25: #{_forward.2} parent=0 // pred_fallthru
    _
  // Predicated region
  $region26: #{_forward.2} parent=0 // pred_check
    _
  $region27: #{_forward.2} parent=0 // pred_check_branch
    %25 = sbr.rel (0) target = $region29
  $region28: #{_forward.2} parent=0 // pred_region
    _
  $region29: #{_forward.2} parent=0 // pred_fallthru
    _
  %p27 = scmp.eq.s32.totalorder 0, 0
  // Predicated region
  $region30: #{_forward.2} parent=0 // pred_check
    %p28 = pneg %p27
  $region31: #{_forward.2} parent=0 // pred_check_branch
    %30 = sbr.rel (%p28) target = $region33
  $region32: #{_forward.2} parent=0 // pred_region
    %31 = vst [vmem:[#allocation2] sm:$0xff] -1e+30
    %32 = vst [vmem:[#allocation3] sm:$0xff] 0.0
    %vm33 = vcmask 523264
    %34 = vst.msk [vmem:[#allocation4] sm:$0xff] %vm33, 0.0
  $region33: #{_forward.2} parent=0 // pred_fallthru
    _
  %v35 = vld [vmem:[%s0] sm:$0xf]
  %v36 = vld [vmem:[%s0 + $0x4] sm:$0xf]
  %v37 = vld [vmem:[%s0 + $0x8] sm:$0xf]
  %v38 = vld [vmem:[%s0 + $0xc] sm:$0xf]
  %v39 = vld [vmem:[%s0 + $0x10] sm:$0xf]
  %v40 = vld [vmem:[%s0 + $0x14] sm:$0xf]
  %v41 = vld [vmem:[%s0 + $0x18] sm:$0xf]
  %v42 = vld [vmem:[%s0 + $0x1c] sm:$0xf]
  %v43 = vunpack.c.l.bf16 %v35
  %v44 = vunpack.c.l.bf16 %v36
  %v45 = vunpack.c.l.bf16 %v37
  %v46 = vunpack.c.l.bf16 %v38
  %v47 = vunpack.c.l.bf16 %v39
  %v48 = vunpack.c.l.bf16 %v40
  %v49 = vunpack.c.l.bf16 %v41
  %v50 = vunpack.c.l.bf16 %v42
  %vm51 = vcmask 523264
  %v52 = vsel %vm51, %v43, 0.0
  %53 = vadd.xlane.f32.xlu0 %v52
  %v54 = vpop.xlane.xlu0 %53
  %v55 = vsel %vm51, %v44, 0.0
  %56 = vadd.xlane.f32.xlu0 %v55
  %v57 = vpop.xlane.xlu0 %56
  %v58 = vsel %vm51, %v45, 0.0
  %59 = vadd.xlane.f32.xlu0 %v58
  %v60 = vpop.xlane.xlu0 %59
  %v61 = vsel %vm51, %v46, 0.0
  %62 = vadd.xlane.f32.xlu0 %v61
  %v63 = vpop.xlane.xlu0 %62
  %v64 = vsel %vm51, %v47, 0.0
  %65 = vadd.xlane.f32.xlu0 %v64
  %v66 = vpop.xlane.xlu0 %65
  %v67 = vsel %vm51, %v48, 0.0
  %68 = vadd.xlane.f32.xlu0 %v67
  %v69 = vpop.xlane.xlu0 %68
  %v70 = vsel %vm51, %v49, 0.0
  %71 = vadd.xlane.f32.xlu0 %v70
  %v72 = vpop.xlane.xlu0 %71
  %v73 = vsel %vm51, %v50, 0.0
  %74 = vadd.xlane.f32.xlu0 %v73
  %v75 = vpop.xlane.xlu0 %74
  %v76 = vrcp.pop 64.0
  %v77 = vmul.f32 %v54, %v76
  %v78 = vmul.f32 %v57, %v76
  %v79 = vmul.f32 %v60, %v76
  %v80 = vmul.f32 %v63, %v76
  %v81 = vmul.f32 %v66, %v76
  %v82 = vmul.f32 %v69, %v76
  %v83 = vmul.f32 %v72, %v76
  %v84 = vmul.f32 %v75, %v76
  %v85 = vsub.f32 %v43, %v77
  %v86 = vsub.f32 %v44, %v78
  %v87 = vsub.f32 %v45, %v79
  %v88 = vsub.f32 %v46, %v80
  %v89 = vsub.f32 %v47, %v81
  %v90 = vsub.f32 %v48, %v82
  %v91 = vsub.f32 %v49, %v83
  %v92 = vsub.f32 %v50, %v84
  %v93 = vmul.f32 %v85, %v85
  %v94 = vmul.f32 %v86, %v86
  %v95 = vmul.f32 %v87, %v87
  %v96 = vmul.f32 %v88, %v88
  %v97 = vmul.f32 %v89, %v89
  %v98 = vmul.f32 %v90, %v90
  %v99 = vmul.f32 %v91, %v91
  %v100 = vmul.f32 %v92, %v92
  %v101 = vsel %vm51, %v93, 0.0
  %102 = vadd.xlane.f32.xlu0 %v101
  %v103 = vpop.xlane.xlu0 %102
  %v104 = vsel %vm51, %v94, 0.0
  %105 = vadd.xlane.f32.xlu0 %v104
  %v106 = vpop.xlane.xlu0 %105
  %v107 = vsel %vm51, %v95, 0.0
  %108 = vadd.xlane.f32.xlu0 %v107
  %v109 = vpop.xlane.xlu0 %108
  %v110 = vsel %vm51, %v96, 0.0
  %111 = vadd.xlane.f32.xlu0 %v110
  %v112 = vpop.xlane.xlu0 %111
  %v113 = vsel %vm51, %v97, 0.0
  %114 = vadd.xlane.f32.xlu0 %v113
  %v115 = vpop.xlane.xlu0 %114
  %v116 = vsel %vm51, %v98, 0.0
  %117 = vadd.xlane.f32.xlu0 %v116
  %v118 = vpop.xlane.xlu0 %117
  %v119 = vsel %vm51, %v99, 0.0
  %120 = vadd.xlane.f32.xlu0 %v119
  %v121 = vpop.xlane.xlu0 %120
  %v122 = vsel %vm51, %v100, 0.0
  %123 = vadd.xlane.f32.xlu0 %v122
  %v124 = vpop.xlane.xlu0 %123
  %v125 = vmul.f32 %v103, %v76
  %v126 = vmul.f32 %v106, %v76
  %v127 = vmul.f32 %v109, %v76
  %v128 = vmul.f32 %v112, %v76
  %v129 = vmul.f32 %v115, %v76
  %v130 = vmul.f32 %v118, %v76
  %v131 = vmul.f32 %v121, %v76
  %v132 = vmul.f32 %v124, %v76
  %v133 = vadd.f32 %v125, 1e-05
  %v134 = vadd.f32 %v126, 1e-05
  %v135 = vadd.f32 %v127, 1e-05
  %v136 = vadd.f32 %v128, 1e-05
  %v137 = vadd.f32 %v129, 1e-05
  %v138 = vadd.f32 %v130, 1e-05
  %v139 = vadd.f32 %v131, 1e-05
  %v140 = vadd.f32 %v132, 1e-05
  %v141 = vrsqrt.pop %v133
  %v142 = vrsqrt.pop %v134
  %v143 = vrsqrt.pop %v135
  %v144 = vrsqrt.pop %v136
  %v145 = vrsqrt.pop %v137
  %v146 = vrsqrt.pop %v138
  %v147 = vrsqrt.pop %v139
  %v148 = vrsqrt.pop %v140
  %v149 = vmul.f32 %v85, %v141
  %v150 = vmul.f32 %v86, %v142
  %v151 = vmul.f32 %v87, %v143
  %v152 = vmul.f32 %v88, %v144
  %v153 = vmul.f32 %v89, %v145
  %v154 = vmul.f32 %v90, %v146
  %v155 = vmul.f32 %v91, %v147
  %v156 = vmul.f32 %v92, %v148
  %v157 = vpack.c.bf16 %v150, %v149
  %v158 = vpack.c.bf16 %v152, %v151
  %v159 = vpack.c.bf16 %v154, %v153
  %v160 = vpack.c.bf16 %v156, %v155
  %v161 = vld [vmem:[%s1] sm:$0xf]
  %v162 = vld [vmem:[%s1 + $0x4] sm:$0xf]
  %v163 = vld [vmem:[%s1 + $0x8] sm:$0xf]
  %v164 = vld [vmem:[%s1 + $0xc] sm:$0xf]
  %v165 = vld [vmem:[%s1 + $0x10] sm:$0xf]
  %v166 = vld [vmem:[%s1 + $0x14] sm:$0xf]
  %v167 = vld [vmem:[%s1 + $0x18] sm:$0xf]
  %v168 = vld [vmem:[%s1 + $0x1c] sm:$0xf]
  %v169 = vld [vmem:[%s2] sm:$0x1]
  %v171 = vlaneseq
  %v172 = vshrl.u32 %v171, 7
  %v173 = vsub.s32 0, %v172
  %v174 = vrot.slane %v169, %v173
  %v184 = vunpack.c.l.b16 %v161
  %v185 = vunpack.c.l.b16 %v162
  %v186 = vunpack.c.l.b16 %v163
  %v187 = vunpack.c.l.b16 %v164
  %v188 = vunpack.c.l.b16 %v165
  %v189 = vunpack.c.l.b16 %v166
  %v190 = vunpack.c.l.b16 %v167
  %v191 = vunpack.c.l.b16 %v168
  %v192 = vpack.c.b16 %v185, %v184
  %v193 = vpack.c.b16 %v187, %v186
  %v194 = vpack.c.b16 %v189, %v188
  %v195 = vpack.c.b16 %v191, %v190
  %v201 = vsel %vm51, %v157, 0
  %v204 = vsel %vm51, %v158, 0
  %v207 = vsel %vm51, %v159, 0
  %v210 = vsel %vm51, %v160, 0
  %212 = vmatprep.subr.bf16.mxu0 0
  %213 = vmatpush1.bf16.msra.mxu0 0
  %214 = vmatprep.subr.bf16.mxu0 0
  %215 = vmatpush1.bf16.msra.mxu0 0
  %216 = vmatprep.subr.bf16.mxu0 0
  %217 = vmatpush1.bf16.msra.mxu0 0
  %218 = vmatprep.subr.bf16.mxu0 0
  %219 = vmatpush1.bf16.msra.mxu0 0
  %220 = vmatprep.subr.bf16.mxu0 0
  %221 = vmatpush1.bf16.msra.mxu0 %v195
  %222 = vmatprep.subr.bf16.mxu0 0
  %223 = vmatpush1.bf16.msra.mxu0 %v194
  %224 = vmatprep.subr.bf16.mxu0 0
  %225 = vmatpush1.bf16.msra.mxu0 %v193
  %226 = vmatprep.subr.bf16.mxu0 0
  %227 = vmatpush1.bf16.msra.mxu0 %v192
  %228 = vmatprep.subr.bf16.mxu0 0
  %229 = vmatpush2.bf16.msra.mxu0 0
  %230 = vmatprep.subr.bf16.mxu0 0
  %231 = vmatpush2.bf16.msra.mxu0 0
  %232 = vmatprep.subr.bf16.mxu0 0
  %233 = vmatpush2.bf16.msra.mxu0 0
  %234 = vmatprep.subr.bf16.mxu0 0
  %235 = vmatpush2.bf16.msra.mxu0 0
  %236 = vmatprep.subr.bf16.mxu0 0
  %237 = vmatpush2.bf16.msra.mxu0 0
  %238 = vmatprep.subr.bf16.mxu0 0
  %239 = vmatpush2.bf16.msra.mxu0 0
  %240 = vmatprep.subr.bf16.mxu0 0
  %241 = vmatpush2.bf16.msra.mxu0 0
  %242 = vmatprep.subr.bf16.mxu0 0
  %243 = vmatpush2.bf16.msra.mxu0 0
  %244 = vmatprep.mubr.bf16.mxu0 0
  %245 = vmatmul.mubr.bf16.gmra.mxu0 %v201
  %v246 = vpop.f32.mrf.mxu0
  %v247 = vadd.f32 %v174, %v246
  %v248 = vpop.f32.mrf.mxu0
  %v249 = vpop.f32.mrf.mxu0
  %v250 = vadd.f32 %v174, %v249
  %v251 = vpop.f32.mrf.mxu0
  %252 = vmatprep.mubr.bf16.mxu0 0
  %253 = vmatmul.mubr.bf16.gmra.mxu0 %v204
  %v254 = vpop.f32.mrf.mxu0
  %v255 = vadd.f32 %v174, %v254
  %v256 = vpop.f32.mrf.mxu0
  %v257 = vpop.f32.mrf.mxu0
  %v258 = vadd.f32 %v174, %v257
  %v259 = vpop.f32.mrf.mxu0
  %260 = vmatprep.mubr.bf16.mxu0 0
  %261 = vmatmul.mubr.bf16.gmra.mxu0 %v207
  %v262 = vpop.f32.mrf.mxu0
  %v263 = vadd.f32 %v174, %v262
  %v264 = vpop.f32.mrf.mxu0
  %v265 = vpop.f32.mrf.mxu0
  %v266 = vadd.f32 %v174, %v265
  %v267 = vpop.f32.mrf.mxu0
  %268 = vmatprep.mubr.bf16.mxu0 0
  %269 = vmatmul.mubr.bf16.gmra.mxu0 %v210
  %v270 = vpop.f32.mrf.mxu0
  %v271 = vadd.f32 %v174, %v270
  %v272 = vpop.f32.mrf.mxu0
  %v273 = vpop.f32.mrf.mxu0
  %v274 = vadd.f32 %v174, %v273
  %v275 = vpop.f32.mrf.mxu0
  %276 = vdwg.mxu0
  %v277 = vld [vmem:[%s3] sm:$0xf]
  %v278 = vld [vmem:[%s3 + $0x4] sm:$0xf]
  %v279 = vld [vmem:[%s3 + $0x8] sm:$0xf]
  %v280 = vld [vmem:[%s3 + $0xc] sm:$0xf]
  %v281 = vld [vmem:[%s3 + $0x10] sm:$0xf]
  %v282 = vld [vmem:[%s3 + $0x14] sm:$0xf]
  %v283 = vld [vmem:[%s3 + $0x18] sm:$0xf]
  %v284 = vld [vmem:[%s3 + $0x1c] sm:$0xf]
  %v285 = vld [vmem:[%s4] sm:$0x1]
  %v287 = vlaneseq
  %v288 = vshrl.u32 %v287, 7
  %v289 = vsub.s32 0, %v288
  %v290 = vrot.slane %v285, %v289
  %v300 = vunpack.c.l.b16 %v277
  %v301 = vunpack.c.l.b16 %v278
  %v302 = vunpack.c.l.b16 %v279
  %v303 = vunpack.c.l.b16 %v280
  %v304 = vunpack.c.l.b16 %v281
  %v305 = vunpack.c.l.b16 %v282
  %v306 = vunpack.c.l.b16 %v283
  %v307 = vunpack.c.l.b16 %v284
  %v308 = vpack.c.b16 %v301, %v300
  %v309 = vpack.c.b16 %v303, %v302
  %v310 = vpack.c.b16 %v305, %v304
  %v311 = vpack.c.b16 %v307, %v306
  %316 = vmatprep.subr.bf16.mxu0 0
  %317 = vmatpush1.bf16.msra.mxu0 0
  %318 = vmatprep.subr.bf16.mxu0 0
  %319 = vmatpush1.bf16.msra.mxu0 0
  %320 = vmatprep.subr.bf16.mxu0 0
  %321 = vmatpush1.bf16.msra.mxu0 0
  %322 = vmatprep.subr.bf16.mxu0 0
  %323 = vmatpush1.bf16.msra.mxu0 0
  %324 = vmatprep.subr.bf16.mxu0 0
  %325 = vmatpush1.bf16.msra.mxu0 %v311
  %326 = vmatprep.subr.bf16.mxu0 0
  %327 = vmatpush1.bf16.msra.mxu0 %v310
  %328 = vmatprep.subr.bf16.mxu0 0
  %329 = vmatpush1.bf16.msra.mxu0 %v309
  %330 = vmatprep.subr.bf16.mxu0 0
  %331 = vmatpush1.bf16.msra.mxu0 %v308
  %332 = vmatprep.subr.bf16.mxu0 0
  %333 = vmatpush2.bf16.msra.mxu0 0
  %334 = vmatprep.subr.bf16.mxu0 0
  %335 = vmatpush2.bf16.msra.mxu0 0
  %336 = vmatprep.subr.bf16.mxu0 0
  %337 = vmatpush2.bf16.msra.mxu0 0
  %338 = vmatprep.subr.bf16.mxu0 0
  %339 = vmatpush2.bf16.msra.mxu0 0
  %340 = vmatprep.subr.bf16.mxu0 0
  %341 = vmatpush2.bf16.msra.mxu0 0
  %342 = vmatprep.subr.bf16.mxu0 0
  %343 = vmatpush2.bf16.msra.mxu0 0
  %344 = vmatprep.subr.bf16.mxu0 0
  %345 = vmatpush2.bf16.msra.mxu0 0
  %346 = vmatprep.subr.bf16.mxu0 0
  %347 = vmatpush2.bf16.msra.mxu0 0
  %348 = vmatprep.mubr.bf16.mxu0 0
  %349 = vmatmul.mubr.bf16.gmra.mxu0 %v201
  %v350 = vpop.f32.mrf.mxu0
  %v351 = vadd.f32 %v290, %v350
  %v352 = vpop.f32.mrf.mxu0
  %v353 = vpop.f32.mrf.mxu0
  %v354 = vadd.f32 %v290, %v353
  %v355 = vpop.f32.mrf.mxu0
  %356 = vmatprep.mubr.bf16.mxu0 0
  %357 = vmatmul.mubr.bf16.gmra.mxu0 %v204
  %v358 = vpop.f32.mrf.mxu0
  %v359 = vadd.f32 %v290, %v358
  %v360 = vpop.f32.mrf.mxu0
  %v361 = vpop.f32.mrf.mxu0
  %v362 = vadd.f32 %v290, %v361
  %v363 = vpop.f32.mrf.mxu0
  %364 = vmatprep.mubr.bf16.mxu0 0
  %365 = vmatmul.mubr.bf16.gmra.mxu0 %v207
  %v366 = vpop.f32.mrf.mxu0
  %v367 = vadd.f32 %v290, %v366
  %v368 = vpop.f32.mrf.mxu0
  %v369 = vpop.f32.mrf.mxu0
  %v370 = vadd.f32 %v290, %v369
  %v371 = vpop.f32.mrf.mxu0
  %372 = vmatprep.mubr.bf16.mxu0 0
  %373 = vmatmul.mubr.bf16.gmra.mxu0 %v210
  %v374 = vpop.f32.mrf.mxu0
  %v375 = vadd.f32 %v290, %v374
  %v376 = vpop.f32.mrf.mxu0
  %v377 = vpop.f32.mrf.mxu0
  %v378 = vadd.f32 %v290, %v377
  %v379 = vpop.f32.mrf.mxu0
  %380 = vdwg.mxu0
  %v381 = vld [vmem:[#allocation2] sm:$0xff]
  %v382 = vrot.slane %v351, 4
  %v383 = vmax.f32 %v351, %v382
  %v384 = vrot.slane %v383, 2
  %v385 = vmax.f32 %v383, %v384
  %v386 = vrot.slane %v385, 1
  %v387 = vmax.f32 %v385, %v386
  %v388 = vrot.slane %v354, 4
  %v389 = vmax.f32 %v354, %v388
  %v390 = vrot.slane %v389, 2
  %v391 = vmax.f32 %v389, %v390
  %v392 = vrot.slane %v391, 1
  %v393 = vmax.f32 %v391, %v392
  %v394 = vrot.slane %v359, 4
  %v395 = vmax.f32 %v359, %v394
  %v396 = vrot.slane %v395, 2
  %v397 = vmax.f32 %v395, %v396
  %v398 = vrot.slane %v397, 1
  %v399 = vmax.f32 %v397, %v398
  %v400 = vrot.slane %v362, 4
  %v401 = vmax.f32 %v362, %v400
  %v402 = vrot.slane %v401, 2
  %v403 = vmax.f32 %v401, %v402
  %v404 = vrot.slane %v403, 1
  %v405 = vmax.f32 %v403, %v404
  %v406 = vrot.slane %v367, 4
  %v407 = vmax.f32 %v367, %v406
  %v408 = vrot.slane %v407, 2
  %v409 = vmax.f32 %v407, %v408
  %v410 = vrot.slane %v409, 1
  %v411 = vmax.f32 %v409, %v410
  %v412 = vrot.slane %v370, 4
  %v413 = vmax.f32 %v370, %v412
  %v414 = vrot.slane %v413, 2
  %v415 = vmax.f32 %v413, %v414
  %v416 = vrot.slane %v415, 1
  %v417 = vmax.f32 %v415, %v416
  %v418 = vrot.slane %v375, 4
  %v419 = vmax.f32 %v375, %v418
  %v420 = vrot.slane %v419, 2
  %v421 = vmax.f32 %v419, %v420
  %v422 = vrot.slane %v421, 1
  %v423 = vmax.f32 %v421, %v422
  %v424 = vrot.slane %v378, 4
  %v425 = vmax.f32 %v378, %v424
  %v426 = vrot.slane %v425, 2
  %v427 = vmax.f32 %v425, %v426
  %v428 = vrot.slane %v427, 1
  %v429 = vmax.f32 %v427, %v428
  %vm438 = vcmask 1041409
  %v439 = vsel %vm438, %v393, %v387
  %vm440 = vcmask 1042434
  %v441 = vsel %vm440, %v399, %v439
  %vm442 = vcmask 1043459
  %v443 = vsel %vm442, %v405, %v441
  %vm444 = vcmask 1044484
  %v445 = vsel %vm444, %v411, %v443
  %vm446 = vcmask 1045509
  %v447 = vsel %vm446, %v417, %v445
  %vm448 = vcmask 1046534
  %v449 = vsel %vm448, %v423, %v447
  %vm450 = vcmask 1047559
  %v451 = vsel %vm450, %v429, %v449
  %v453 = vmax.f32 %v381, %v451
  %v454 = vsub.f32 %v381, %v453
  %v455 = vmul.f32 %v454, 1.442695
  %v456 = vpow.pop %v455
  %v458 = vcombine.high %v453, %v453
  %v460 = vunpack.c.l.s4 1966171168
  %v461 = vunpack.c.0.s8 %v460
  %v462 = vlaneseq
  %v463 = vshrl.u32 %v462, 7
  %v464 = vsub.s32 %v461, %v463
  %v465 = vrot.slane %v453, %v464
  %v467 = vunpack.c.l.s4 1966171168
  %v468 = vunpack.c.0.s8 %v467
  %v469 = vlaneseq
  %v470 = vshrl.u32 %v469, 7
  %v471 = vsub.s32 %v468, %v470
  %v472 = vrot.slane %v458, %v471
  %v473 = vcombine.high %v465, %v465
  %v474 = vcombine.high %v472, %v472
  %v476 = vunpack.c.l.s4 1966171168
  %v477 = vunpack.c.0.s8 %v476
  %v478 = vlaneseq
  %v479 = vshrl.u32 %v478, 7
  %v480 = vsub.s32 %v477, %v479
  %v481 = vrot.slane %v465, %v480
  %v483 = vunpack.c.l.s4 1966171168
  %v484 = vunpack.c.0.s8 %v483
  %v485 = vlaneseq
  %v486 = vshrl.u32 %v485, 7
  %v487 = vsub.s32 %v484, %v486
  %v488 = vrot.slane %v472, %v487
  %v490 = vunpack.c.l.s4 1966171168
  %v491 = vunpack.c.0.s8 %v490
  %v492 = vlaneseq
  %v493 = vshrl.u32 %v492, 7
  %v494 = vsub.s32 %v491, %v493
  %v495 = vrot.slane %v473, %v494
  %v497 = vunpack.c.l.s4 1966171168
  %v498 = vunpack.c.0.s8 %v497
  %v499 = vlaneseq
  %v500 = vshrl.u32 %v499, 7
  %v501 = vsub.s32 %v498, %v500
  %v502 = vrot.slane %v474, %v501
  %v503 = vcombine.high %v481, %v481
  %v504 = vcombine.high %v488, %v488
  %v505 = vcombine.high %v495, %v495
  %v506 = vcombine.high %v502, %v502
  %v507 = vlaneseq
  %v508 = vshrl.u32 %v507, 7
  %v509 = vsub.s32 0, %v508
  %v510 = vrot.slane %v481, %v509
  %v511 = vlaneseq
  %v512 = vshrl.u32 %v511, 7
  %v513 = vsub.s32 0, %v512
  %v514 = vrot.slane %v495, %v513
  %v515 = vlaneseq
  %v516 = vshrl.u32 %v515, 7
  %v517 = vsub.s32 0, %v516
  %v518 = vrot.slane %v503, %v517
  %v519 = vlaneseq
  %v520 = vshrl.u32 %v519, 7
  %v521 = vsub.s32 0, %v520
  %v522 = vrot.slane %v505, %v521
  %v523 = vlaneseq
  %v524 = vshrl.u32 %v523, 7
  %v525 = vsub.s32 0, %v524
  %v526 = vrot.slane %v488, %v525
  %v527 = vlaneseq
  %v528 = vshrl.u32 %v527, 7
  %v529 = vsub.s32 0, %v528
  %v530 = vrot.slane %v502, %v529
  %v531 = vlaneseq
  %v532 = vshrl.u32 %v531, 7
  %v533 = vsub.s32 0, %v532
  %v534 = vrot.slane %v504, %v533
  %v535 = vlaneseq
  %v536 = vshrl.u32 %v535, 7
  %v537 = vsub.s32 0, %v536
  %v538 = vrot.slane %v506, %v537
  %v547 = vsub.f32 %v351, %v510
  %v548 = vsub.f32 %v354, %v514
  %v549 = vsub.f32 %v359, %v518
  %v550 = vsub.f32 %v362, %v522
  %v551 = vsub.f32 %v367, %v526
  %v552 = vsub.f32 %v370, %v530
  %v553 = vsub.f32 %v375, %v534
  %v554 = vsub.f32 %v378, %v538
  %v555 = vmul.f32 %v547, 1.442695
  %v556 = vpow.pop %v555
  %v557 = vmul.f32 %v548, 1.442695
  %v558 = vpow.pop %v557
  %v559 = vmul.f32 %v549, 1.442695
  %v560 = vpow.pop %v559
  %v561 = vmul.f32 %v550, 1.442695
  %v562 = vpow.pop %v561
  %v563 = vmul.f32 %v551, 1.442695
  %v564 = vpow.pop %v563
  %v565 = vmul.f32 %v552, 1.442695
  %v566 = vpow.pop %v565
  %v567 = vmul.f32 %v553, 1.442695
  %v568 = vpow.pop %v567
  %v569 = vmul.f32 %v554, 1.442695
  %v570 = vpow.pop %v569
  %v571 = vld [vmem:[#allocation3] sm:$0xff]
  %v572 = vmul.f32 %v456, %v571
  %v573 = vrot.slane %v556, 4
  %v574 = vadd.f32 %v556, %v573
  %v575 = vrot.slane %v574, 2
  %v576 = vadd.f32 %v574, %v575
  %v577 = vrot.slane %v576, 1
  %v578 = vadd.f32 %v576, %v577
  %v579 = vrot.slane %v558, 4
  %v580 = vadd.f32 %v558, %v579
  %v581 = vrot.slane %v580, 2
  %v582 = vadd.f32 %v580, %v581
  %v583 = vrot.slane %v582, 1
  %v584 = vadd.f32 %v582, %v583
  %v585 = vrot.slane %v560, 4
  %v586 = vadd.f32 %v560, %v585
  %v587 = vrot.slane %v586, 2
  %v588 = vadd.f32 %v586, %v587
  %v589 = vrot.slane %v588, 1
  %v590 = vadd.f32 %v588, %v589
  %v591 = vrot.slane %v562, 4
  %v592 = vadd.f32 %v562, %v591
  %v593 = vrot.slane %v592, 2
  %v594 = vadd.f32 %v592, %v593
  %v595 = vrot.slane %v594, 1
  %v596 = vadd.f32 %v594, %v595
  %v597 = vrot.slane %v564, 4
  %v598 = vadd.f32 %v564, %v597
  %v599 = vrot.slane %v598, 2
  %v600 = vadd.f32 %v598, %v599
  %v601 = vrot.slane %v600, 1
  %v602 = vadd.f32 %v600, %v601
  %v603 = vrot.slane %v566, 4
  %v604 = vadd.f32 %v566, %v603
  %v605 = vrot.slane %v604, 2
  %v606 = vadd.f32 %v604, %v605
  %v607 = vrot.slane %v606, 1
  %v608 = vadd.f32 %v606, %v607
  %v609 = vrot.slane %v568, 4
  %v610 = vadd.f32 %v568, %v609
  %v611 = vrot.slane %v610, 2
  %v612 = vadd.f32 %v610, %v611
  %v613 = vrot.slane %v612, 1
  %v614 = vadd.f32 %v612, %v613
  %v615 = vrot.slane %v570, 4
  %v616 = vadd.f32 %v570, %v615
  %v617 = vrot.slane %v616, 2
  %v618 = vadd.f32 %v616, %v617
  %v619 = vrot.slane %v618, 1
  %v620 = vadd.f32 %v618, %v619
  %v629 = vsel %vm438, %v584, %v578
  %v630 = vsel %vm440, %v590, %v629
  %v631 = vsel %vm442, %v596, %v630
  %v632 = vsel %vm444, %v602, %v631
  %v633 = vsel %vm446, %v608, %v632
  %v634 = vsel %vm448, %v614, %v633
  %v635 = vsel %vm450, %v620, %v634
  %v637 = vadd.f32 %v572, %v635
  %638 = vst [vmem:[#allocation3] sm:$0xff] %v637
  %639 = vst [vmem:[#allocation2] sm:$0xff] %v453
  %v640 = vpack.c.bf16 %v558, %v556
  %v641 = vpack.c.bf16 %v562, %v560
  %v642 = vpack.c.bf16 %v566, %v564
  %v643 = vpack.c.bf16 %v570, %v568
  %v644 = vld [vmem:[%s5] sm:$0xf]
  %v645 = vld [vmem:[%s5 + $0x4] sm:$0xf]
  %v646 = vld [vmem:[%s5 + $0x8] sm:$0xf]
  %v647 = vld [vmem:[%s5 + $0xc] sm:$0xf]
  %v648 = vld [vmem:[%s5 + $0x10] sm:$0xf]
  %v649 = vld [vmem:[%s5 + $0x14] sm:$0xf]
  %v650 = vld [vmem:[%s5 + $0x18] sm:$0xf]
  %v651 = vld [vmem:[%s5 + $0x1c] sm:$0xf]
  %v652 = vld [vmem:[%s5 + $0x20] sm:$0xf]
  %v653 = vld [vmem:[%s5 + $0x24] sm:$0xf]
  %v654 = vld [vmem:[%s5 + $0x28] sm:$0xf]
  %v655 = vld [vmem:[%s5 + $0x2c] sm:$0xf]
  %v656 = vld [vmem:[%s5 + $0x30] sm:$0xf]
  %v657 = vld [vmem:[%s5 + $0x34] sm:$0xf]
  %v658 = vld [vmem:[%s5 + $0x38] sm:$0xf]
  %v659 = vld [vmem:[%s5 + $0x3c] sm:$0xf]
  %v676 = vunpack.c.l.b16 %v644
  %v677 = vunpack.c.l.b16 %v645
  %v678 = vunpack.c.l.b16 %v646
  %v679 = vunpack.c.l.b16 %v647
  %v680 = vunpack.c.l.b16 %v648
  %v681 = vunpack.c.l.b16 %v649
  %v682 = vunpack.c.l.b16 %v650
  %v683 = vunpack.c.l.b16 %v651
  %v684 = vunpack.c.l.b16 %v652
  %v685 = vunpack.c.l.b16 %v653
  %v686 = vunpack.c.l.b16 %v654
  %v687 = vunpack.c.l.b16 %v655
  %v688 = vunpack.c.l.b16 %v656
  %v689 = vunpack.c.l.b16 %v657
  %v690 = vunpack.c.l.b16 %v658
  %v691 = vunpack.c.l.b16 %v659
  %v692 = vpack.c.b16 %v677, %v676
  %v693 = vpack.c.b16 %v679, %v678
  %v694 = vpack.c.b16 %v681, %v680
  %v695 = vpack.c.b16 %v683, %v682
  %v696 = vpack.c.b16 %v685, %v684
  %v697 = vpack.c.b16 %v687, %v686
  %v698 = vpack.c.b16 %v689, %v688
  %v699 = vpack.c.b16 %v691, %v690
  %708 = vmatprep.subr.bf16.mxu0 0
  %709 = vmatpush1.bf16.msra.mxu0 %v699
  %710 = vmatprep.subr.bf16.mxu0 0
  %711 = vmatpush1.bf16.msra.mxu0 %v698
  %712 = vmatprep.subr.bf16.mxu0 0
  %713 = vmatpush1.bf16.msra.mxu0 %v697
  %714 = vmatprep.subr.bf16.mxu0 0
  %715 = vmatpush1.bf16.msra.mxu0 %v696
  %716 = vmatprep.subr.bf16.mxu0 0
  %717 = vmatpush1.bf16.msra.mxu0 %v695
  %718 = vmatprep.subr.bf16.mxu0 0
  %719 = vmatpush1.bf16.msra.mxu0 %v694
  %720 = vmatprep.subr.bf16.mxu0 0
  %721 = vmatpush1.bf16.msra.mxu0 %v693
  %722 = vmatprep.subr.bf16.mxu0 0
  %723 = vmatpush1.bf16.msra.mxu0 %v692
  %724 = vmatprep.subr.bf16.mxu0 0
  %725 = vmatpush2.bf16.msra.mxu0 0
  %726 = vmatprep.subr.bf16.mxu0 0
  %727 = vmatpush2.bf16.msra.mxu0 0
  %728 = vmatprep.subr.bf16.mxu0 0
  %729 = vmatpush2.bf16.msra.mxu0 0
  %730 = vmatprep.subr.bf16.mxu0 0
  %731 = vmatpush2.bf16.msra.mxu0 0
  %732 = vmatprep.subr.bf16.mxu0 0
  %733 = vmatpush2.bf16.msra.mxu0 0
  %734 = vmatprep.subr.bf16.mxu0 0
  %735 = vmatpush2.bf16.msra.mxu0 0
  %736 = vmatprep.subr.bf16.mxu0 0
  %737 = vmatpush2.bf16.msra.mxu0 0
  %738 = vmatprep.subr.bf16.mxu0 0
  %739 = vmatpush2.bf16.msra.mxu0 0
  %740 = vmatprep.mubr.bf16.mxu0 0
  %741 = vmatmul.mubr.bf16.gmra.mxu0 %v640
  %v742 = vpop.f32.mrf.mxu0
  %v743 = vadd.f32 0.0, %v742
  %v744 = vpop.f32.mrf.mxu0
  %v745 = vpop.f32.mrf.mxu0
  %v746 = vadd.f32 0.0, %v745
  %v747 = vpop.f32.mrf.mxu0
  %748 = vmatprep.mubr.bf16.mxu0 0
  %749 = vmatmul.mubr.bf16.gmra.mxu0 %v641
  %v750 = vpop.f32.mrf.mxu0
  %v751 = vadd.f32 0.0, %v750
  %v752 = vpop.f32.mrf.mxu0
  %v753 = vpop.f32.mrf.mxu0
  %v754 = vadd.f32 0.0, %v753
  %v755 = vpop.f32.mrf.mxu0
  %756 = vmatprep.mubr.bf16.mxu0 0
  %757 = vmatmul.mubr.bf16.gmra.mxu0 %v642
  %v758 = vpop.f32.mrf.mxu0
  %v759 = vadd.f32 0.0, %v758
  %v760 = vpop.f32.mrf.mxu0
  %v761 = vpop.f32.mrf.mxu0
  %v762 = vadd.f32 0.0, %v761
  %v763 = vpop.f32.mrf.mxu0
  %764 = vmatprep.mubr.bf16.mxu0 0
  %765 = vmatmul.mubr.bf16.gmra.mxu0 %v643
  %v766 = vpop.f32.mrf.mxu0
  %v767 = vadd.f32 0.0, %v766
  %v768 = vpop.f32.mrf.mxu0
  %v769 = vpop.f32.mrf.mxu0
  %v770 = vadd.f32 0.0, %v769
  %v771 = vpop.f32.mrf.mxu0
  %772 = vdwg.mxu0
  %v773 = vmul.f32 %v743, %v247
  %v774 = vmul.f32 %v746, %v250
  %v775 = vmul.f32 %v751, %v255
  %v776 = vmul.f32 %v754, %v258
  %v777 = vmul.f32 %v759, %v263
  %v778 = vmul.f32 %v762, %v266
  %v779 = vmul.f32 %v767, %v271
  %v780 = vmul.f32 %v770, %v274
  %v781 = vsel %vm51, %v773, 0.0
  %v782 = vrot.slane %v781, 4
  %v783 = vadd.f32 %v781, %v782
  %v784 = vrot.slane %v783, 2
  %v785 = vadd.f32 %v783, %v784
  %v786 = vrot.slane %v785, 1
  %v787 = vadd.f32 %v785, %v786
  %v788 = vsel %vm51, %v774, 0.0
  %v789 = vrot.slane %v788, 4
  %v790 = vadd.f32 %v788, %v789
  %v791 = vrot.slane %v790, 2
  %v792 = vadd.f32 %v790, %v791
  %v793 = vrot.slane %v792, 1
  %v794 = vadd.f32 %v792, %v793
  %v795 = vsel %vm51, %v775, 0.0
  %v796 = vrot.slane %v795, 4
  %v797 = vadd.f32 %v795, %v796
  %v798 = vrot.slane %v797, 2
  %v799 = vadd.f32 %v797, %v798
  %v800 = vrot.slane %v799, 1
  %v801 = vadd.f32 %v799, %v800
  %v802 = vsel %vm51, %v776, 0.0
  %v803 = vrot.slane %v802, 4
  %v804 = vadd.f32 %v802, %v803
  %v805 = vrot.slane %v804, 2
  %v806 = vadd.f32 %v804, %v805
  %v807 = vrot.slane %v806, 1
  %v808 = vadd.f32 %v806, %v807
  %v809 = vsel %vm51, %v777, 0.0
  %v810 = vrot.slane %v809, 4
  %v811 = vadd.f32 %v809, %v810
  %v812 = vrot.slane %v811, 2
  %v813 = vadd.f32 %v811, %v812
  %v814 = vrot.slane %v813, 1
  %v815 = vadd.f32 %v813, %v814
  %v816 = vsel %vm51, %v778, 0.0
  %v817 = vrot.slane %v816, 4
  %v818 = vadd.f32 %v816, %v817
  %v819 = vrot.slane %v818, 2
  %v820 = vadd.f32 %v818, %v819
  %v821 = vrot.slane %v820, 1
  %v822 = vadd.f32 %v820, %v821
  %v823 = vsel %vm51, %v779, 0.0
  %v824 = vrot.slane %v823, 4
  %v825 = vadd.f32 %v823, %v824
  %v826 = vrot.slane %v825, 2
  %v827 = vadd.f32 %v825, %v826
  %v828 = vrot.slane %v827, 1
  %v829 = vadd.f32 %v827, %v828
  %v830 = vsel %vm51, %v780, 0.0
  %v831 = vrot.slane %v830, 4
  %v832 = vadd.f32 %v830, %v831
  %v833 = vrot.slane %v832, 2
  %v834 = vadd.f32 %v832, %v833
  %v835 = vrot.slane %v834, 1
  %v836 = vadd.f32 %v834, %v835
  %v837 = vld [vmem:[%s6] sm:$0xff]
  %v838 = vld [vmem:[%s6 + $0x8] sm:$0xff]
  %v839 = vld [vmem:[%s6 + $0x10] sm:$0xff]
  %v840 = vld [vmem:[%s6 + $0x18] sm:$0xff]
  %v841 = vld [vmem:[%s6 + $0x20] sm:$0xff]
  %v842 = vld [vmem:[%s6 + $0x28] sm:$0xff]
  %v843 = vld [vmem:[%s6 + $0x30] sm:$0xff]
  %v844 = vld [vmem:[%s6 + $0x38] sm:$0xff]
  %v845 = vld [vmem:[%s6 + $0x40] sm:$0xff]
  %v846 = vld [vmem:[%s6 + $0x48] sm:$0xff]
  %v847 = vld [vmem:[%s6 + $0x50] sm:$0xff]
  %v848 = vld [vmem:[%s6 + $0x58] sm:$0xff]
  %v849 = vld [vmem:[%s6 + $0x60] sm:$0xff]
  %v850 = vld [vmem:[%s6 + $0x68] sm:$0xff]
  %v851 = vld [vmem:[%s6 + $0x70] sm:$0xff]
  %v852 = vld [vmem:[%s6 + $0x78] sm:$0xff]
  %853 = vmatprep.subr.mxu0 0.0
  %854 = vmatpush1.msra.mxu0 %v852
  %855 = vmatprep.subr.mxu0 0.0
  %856 = vmatpush1.msra.mxu0 %v851
  %857 = vmatprep.subr.mxu0 0.0
  %858 = vmatpush1.msra.mxu0 %v850
  %859 = vmatprep.subr.mxu0 0.0
  %860 = vmatpush1.msra.mxu0 %v849
  %861 = vmatprep.subr.mxu0 0.0
  %862 = vmatpush1.msra.mxu0 %v848
  %863 = vmatprep.subr.mxu0 0.0
  %864 = vmatpush1.msra.mxu0 %v847
  %865 = vmatprep.subr.mxu0 0.0
  %866 = vmatpush1.msra.mxu0 %v846
  %867 = vmatprep.subr.mxu0 0.0
  %868 = vmatpush1.msra.mxu0 %v845
  %869 = vmatprep.subr.mxu0 0.0
  %870 = vmatpush1.msra.mxu0 %v844
  %871 = vmatprep.subr.mxu0 0.0
  %872 = vmatpush1.msra.mxu0 %v843
  %873 = vmatprep.subr.mxu0 0.0
  %874 = vmatpush1.msra.mxu0 %v842
  %875 = vmatprep.subr.mxu0 0.0
  %876 = vmatpush1.msra.mxu0 %v841
  %877 = vmatprep.subr.mxu0 0.0
  %878 = vmatpush1.msra.mxu0 %v840
  %879 = vmatprep.subr.mxu0 0.0
  %880 = vmatpush1.msra.mxu0 %v839
  %881 = vmatprep.subr.mxu0 0.0
  %882 = vmatpush1.msra.mxu0 %v838
  %883 = vmatprep.subr.mxu0 0.0
  %884 = vmatpush1.msra.mxu0 %v837
  %885 = vmatprep.subr.mxu0 0.0
  %886 = vmatpush2.msra.mxu0 0.0
  %887 = vmatprep.subr.mxu0 0.0
  %888 = vmatpush2.msra.mxu0 0.0
  %889 = vmatprep.subr.mxu0 0.0
  %890 = vmatpush2.msra.mxu0 0.0
  %891 = vmatprep.subr.mxu0 0.0
  %892 = vmatpush2.msra.mxu0 0.0
  %893 = vmatprep.subr.mxu0 0.0
  %894 = vmatpush2.msra.mxu0 0.0
  %895 = vmatprep.subr.mxu0 0.0
  %896 = vmatpush2.msra.mxu0 0.0
  %897 = vmatprep.subr.mxu0 0.0
  %898 = vmatpush2.msra.mxu0 0.0
  %899 = vmatprep.subr.mxu0 0.0
  %900 = vmatpush2.msra.mxu0 0.0
  %901 = vmatprep.subr.mxu0 0.0
  %902 = vmatpush2.msra.mxu0 0.0
  %903 = vmatprep.subr.mxu0 0.0
  %904 = vmatpush2.msra.mxu0 0.0
  %905 = vmatprep.subr.mxu0 0.0
  %906 = vmatpush2.msra.mxu0 0.0
  %907 = vmatprep.subr.mxu0 0.0
  %908 = vmatpush2.msra.mxu0 0.0
  %909 = vmatprep.subr.mxu0 0.0
  %910 = vmatpush2.msra.mxu0 0.0
  %911 = vmatprep.subr.mxu0 0.0
  %912 = vmatpush2.msra.mxu0 0.0
  %913 = vmatprep.subr.mxu0 0.0
  %914 = vmatpush2.msra.mxu0 0.0
  %915 = vmatprep.subr.mxu0 0.0
  %916 = vmatpush2.msra.mxu0 0.0
  %917 = vmatprep.mubr.f32.mxu0 0.0
  %918 = vmatmul.mubr.f32.gmra.mxu0 %v456
  %v919 = vpop.f32.mrf.mxu0
  %v920 = vadd.f32 0.0, %v919
  %v921 = vpop.f32.mrf.mxu0
  %922 = vdwg.mxu0
  %v923 = vld [vmem:[#allocation4] sm:$0xff]
  %v924 = vmul.f32 %v920, %v923
  %v933 = vsel %vm438, %v794, %v787
  %v934 = vsel %vm440, %v801, %v933
  %v935 = vsel %vm442, %v808, %v934
  %v936 = vsel %vm444, %v815, %v935
  %v937 = vsel %vm446, %v822, %v936
  %v938 = vsel %vm448, %v829, %v937
  %v939 = vsel %vm450, %v836, %v938
  %v941 = vadd.f32 %v924, %v939
  %942 = vst.msk [vmem:[#allocation4] sm:$0xff] %vm51, %v941
  // Predicated region
  $region34: #{_forward.2} parent=0 // pred_check
    %p943 = pneg %p27
  $region35: #{_forward.2} parent=0 // pred_check_branch
    %945 = sbr.rel (%p943) target = $region37
  $region36: #{_forward.2} parent=0 // pred_region
    %v946 = vld [vmem:[#allocation3] sm:$0xff]
    %v947 = vld [vmem:[%s6] sm:$0xff]
    %v948 = vld [vmem:[%s6 + $0x8] sm:$0xff]
    %v949 = vld [vmem:[%s6 + $0x10] sm:$0xff]
    %v950 = vld [vmem:[%s6 + $0x18] sm:$0xff]
    %v951 = vld [vmem:[%s6 + $0x20] sm:$0xff]
    %v952 = vld [vmem:[%s6 + $0x28] sm:$0xff]
    %v953 = vld [vmem:[%s6 + $0x30] sm:$0xff]
    %v954 = vld [vmem:[%s6 + $0x38] sm:$0xff]
    %v955 = vld [vmem:[%s6 + $0x40] sm:$0xff]
    %v956 = vld [vmem:[%s6 + $0x48] sm:$0xff]
    %v957 = vld [vmem:[%s6 + $0x50] sm:$0xff]
    %v958 = vld [vmem:[%s6 + $0x58] sm:$0xff]
    %v959 = vld [vmem:[%s6 + $0x60] sm:$0xff]
    %v960 = vld [vmem:[%s6 + $0x68] sm:$0xff]
    %v961 = vld [vmem:[%s6 + $0x70] sm:$0xff]
    %v962 = vld [vmem:[%s6 + $0x78] sm:$0xff]
    %963 = vmatprep.subr.mxu0 0.0
    %964 = vmatpush1.msra.mxu0 %v962
    %965 = vmatprep.subr.mxu0 0.0
    %966 = vmatpush1.msra.mxu0 %v961
    %967 = vmatprep.subr.mxu0 0.0
    %968 = vmatpush1.msra.mxu0 %v960
    %969 = vmatprep.subr.mxu0 0.0
    %970 = vmatpush1.msra.mxu0 %v959
    %971 = vmatprep.subr.mxu0 0.0
    %972 = vmatpush1.msra.mxu0 %v958
    %973 = vmatprep.subr.mxu0 0.0
    %974 = vmatpush1.msra.mxu0 %v957
    %975 = vmatprep.subr.mxu0 0.0
    %976 = vmatpush1.msra.mxu0 %v956
    %977 = vmatprep.subr.mxu0 0.0
    %978 = vmatpush1.msra.mxu0 %v955
    %979 = vmatprep.subr.mxu0 0.0
    %980 = vmatpush1.msra.mxu0 %v954
    %981 = vmatprep.subr.mxu0 0.0
    %982 = vmatpush1.msra.mxu0 %v953
    %983 = vmatprep.subr.mxu0 0.0
    %984 = vmatpush1.msra.mxu0 %v952
    %985 = vmatprep.subr.mxu0 0.0
    %986 = vmatpush1.msra.mxu0 %v951
    %987 = vmatprep.subr.mxu0 0.0
    %988 = vmatpush1.msra.mxu0 %v950
    %989 = vmatprep.subr.mxu0 0.0
    %990 = vmatpush1.msra.mxu0 %v949
    %991 = vmatprep.subr.mxu0 0.0
    %992 = vmatpush1.msra.mxu0 %v948
    %993 = vmatprep.subr.mxu0 0.0
    %994 = vmatpush1.msra.mxu0 %v947
    %995 = vmatprep.subr.mxu0 0.0
    %996 = vmatpush2.msra.mxu0 0.0
    %997 = vmatprep.subr.mxu0 0.0
    %998 = vmatpush2.msra.mxu0 0.0
    %999 = vmatprep.subr.mxu0 0.0
    %1000 = vmatpush2.msra.mxu0 0.0
    %1001 = vmatprep.subr.mxu0 0.0
    %1002 = vmatpush2.msra.mxu0 0.0
    %1003 = vmatprep.subr.mxu0 0.0
    %1004 = vmatpush2.msra.mxu0 0.0
    %1005 = vmatprep.subr.mxu0 0.0
    %1006 = vmatpush2.msra.mxu0 0.0
    %1007 = vmatprep.subr.mxu0 0.0
    %1008 = vmatpush2.msra.mxu0 0.0
    %1009 = vmatprep.subr.mxu0 0.0
    %1010 = vmatpush2.msra.mxu0 0.0
    %1011 = vmatprep.subr.mxu0 0.0
    %1012 = vmatpush2.msra.mxu0 0.0
    %1013 = vmatprep.subr.mxu0 0.0
    %1014 = vmatpush2.msra.mxu0 0.0
    %1015 = vmatprep.subr.mxu0 0.0
    %1016 = vmatpush2.msra.mxu0 0.0
    %1017 = vmatprep.subr.mxu0 0.0
    %1018 = vmatpush2.msra.mxu0 0.0
    %1019 = vmatprep.subr.mxu0 0.0
    %1020 = vmatpush2.msra.mxu0 0.0
    %1021 = vmatprep.subr.mxu0 0.0
    %1022 = vmatpush2.msra.mxu0 0.0
    %1023 = vmatprep.subr.mxu0 0.0
    %1024 = vmatpush2.msra.mxu0 0.0
    %1025 = vmatprep.subr.mxu0 0.0
    %1026 = vmatpush2.msra.mxu0 0.0
    %1027 = vmatprep.mubr.f32.mxu0 0.0
    %1028 = vmatmul.mubr.f32.gmra.mxu0 %v946
    %v1029 = vpop.f32.mrf.mxu0
    %v1030 = vadd.f32 0.0, %v1029
    %v1031 = vpop.f32.mrf.mxu0
    %1032 = vdwg.mxu0
    %v1033 = vld [vmem:[#allocation4] sm:$0xff]
    %v1034 = vrcp.pop %v1030
    %v1035 = vmul.f32 %v1033, %v1034
    %1036 = vst.msk [vmem:[%s7] sm:$0xff] %vm51, %v1035
  $region37: #{_forward.2} parent=0 // pred_fallthru
    _
  // Predicated region
  $region38: #{_forward.2} parent=0 // pred_check
    _
  $region39: #{_forward.2} parent=0 // pred_check_branch
    %1038 = sbr.rel (0) target = $region41
  $region40: #{_forward.2} parent=0 // pred_region
    _
  $region41: #{_forward.2} parent=0 // pred_fallthru
    _
  // Predicated region
  $region42: #{_forward.2} parent=0 // pred_check
    _
  $region43: #{_forward.2} parent=0 // pred_check_branch
    %1040 = sbr.rel (0) target = $region45
  $region44: #{_forward.2} parent=0 // pred_region
    _
  $region45: #{_forward.2} parent=0 // pred_fallthru
    _

</llo_original>
